<compile_context>
chip_gen: v7x
topology: tpu7x:2x2x1
jax: 0.10.0
libtpu: 0.0.40
codegen_flags: <defaults>
</compile_context>

<pallas_src>
import functools

import numpy as np
import jax
import jax.numpy as jnp
from jax import lax
from jax.experimental import pallas as pl
from jax.experimental.pallas import tpu as pltpu


def _diffloss_partial_kernel(d1_ref, d2_ref, s_ref, sq1_ref, sq2_ref, *,
                             n_valid, tk, cps, needs_mask):
    # d1_ref, d2_ref : (B, tk) native dtype  -- current feature chunk
    # s_ref          : (B, B)  f32           -- partial D1 @ D2^T for this split
    # sq1_ref/sq2_ref: (B, 1)  f32           -- partial row sums of squares
    c = pl.program_id(0)          # split index (parallel; one per TC on v7x)
    k = pl.program_id(1)          # feature-chunk index within the split

    @pl.when(k == 0)
    def _init():
        s_ref[...] = jnp.zeros_like(s_ref)
        sq1_ref[...] = jnp.zeros_like(sq1_ref)
        sq2_ref[...] = jnp.zeros_like(sq2_ref)

    d1 = d1_ref[...]              # (B, tk), native dtype
    d2 = d2_ref[...]

    if needs_mask:
        # Zero out lanes past the true feature dim (ragged last chunk) and
        # entire phantom chunks (when the split does not divide evenly).
        off = (c * cps + k) * tk
        col = lax.broadcasted_iota(jnp.int32, d1.shape, 1)
        mask = col < (n_valid - off)
        d1 = jnp.where(mask, d1, jnp.zeros_like(d1))
        d2 = jnp.where(mask, d2, jnp.zeros_like(d2))

    # "NT" matmul on the MXU: contract the feature (lane) axis of both
    # operands; accumulate in f32.  Native bf16 operands use the bf16 MXU path.
    prec = lax.Precision.HIGHEST if d1.dtype == jnp.float32 else None
    s_ref[...] += lax.dot_general(
        d1, d2, (((1,), (1,)), ((), ())),
        precision=prec, preferred_element_type=jnp.float32)

    # Row sums of squares in f32 (cast first: v5e VPU has no bf16 VALU).
    d1f = d1.astype(jnp.float32)
    d2f = d2.astype(jnp.float32)
    sq1_ref[...] += jnp.sum(d1f * d1f, axis=1, keepdims=True)
    sq2_ref[...] += jnp.sum(d2f * d2f, axis=1, keepdims=True)


def _choose_tk(B, N, itemsize):
    """Lane-dense feature chunk: ~MiB-scale DMAs, bounded by a v7x-safe VMEM budget."""
    n_ceil = (-(-max(N, 1) // 128)) * 128            # 128-aligned cover of N
    target = 2 * 1024 * 1024                         # ~2 MiB per input block
    tk = (target // max(B * itemsize, 1)) // 128 * 128
    tk = max(tk, 512)
    tk = min(tk, n_ceil)
    # VMEM budget: 2 inputs x 2 buffers x B*tk*itemsize + small outputs,
    # kept under ~48 MiB so it also fits v7x's 64 MiB per-core VMEM.
    budget = 48 * 1024 * 1024
    fixed = 2 * (B * B * 4 + 2 * B * 4)
    per_tk = 2 * 2 * B * itemsize
    max_tk = max((budget - fixed) // max(per_tk, 1) // 128 * 128, 128)
    return int(max(128, min(tk, max_tk)))


def diff_loss(d1, d2, *, tk=None, use_pallas=None):
    """DiffLoss forward. d1, d2: arrays with the same leading batch dim B and the
    same flattened per-sample feature size. Returns a scalar float32."""
    B = d1.shape[0]
    if d2.shape[0] != B:
        raise ValueError("D1 and D2 must have the same batch size")

    dt = jnp.promote_types(d1.dtype, d2.dtype)
    if not jnp.issubdtype(dt, jnp.floating):
        dt = jnp.float32

    # reshape of contiguous trailing dims is free; astype only if dtypes differ.
    d1f = d1.reshape(B, -1)
    d2f = d2.reshape(B, -1)
    if d1f.dtype != dt:
        d1f = d1f.astype(dt)
    if d2f.dtype != dt:
        d2f = d2f.astype(dt)

    N = d1f.shape[1]
    if d2f.shape[1] != N:
        raise ValueError("D1 and D2 must flatten to the same (B, N)")
    if N == 0:
        return jnp.zeros((), jnp.float32)

    itemsize = jnp.dtype(dt).itemsize
    if use_pallas is None:
        # Tiny inputs are launch-overhead dominated: plain XLA is faster.
        use_pallas = (B * N * itemsize) >= (1 << 20)
    if not use_pallas:
        return _diff_loss_ref(d1f, d2f)

    if tk is None:
        tk = _choose_tk(B, N, itemsize)
    tk = max(128, (int(tk) // 128) * 128)

    n_chunks = -(-N // tk)
    num_splits = 2 if n_chunks >= 2 else 1       # 2 TCs on v7x; harmless on 1-TC chips
    cps = -(-n_chunks // num_splits)             # chunks per split
    needs_mask = (num_splits * cps * tk) != N
    has_phantom = (num_splits * cps) > n_chunks

    if has_phantom:
        # Clamp phantom trailing chunks in-bounds; their data is fully masked.
        def in_map(c, k):
            return (0, jnp.minimum(c * cps + k, n_chunks - 1))
    else:
        def in_map(c, k):
            return (0, c * cps + k)

    kernel = functools.partial(
        _diffloss_partial_kernel,
        n_valid=N, tk=tk, cps=cps, needs_mask=needs_mask)

    vmem_bytes = 2 * 2 * B * tk * itemsize + 2 * (B * B * 4 + 2 * B * 4) + (4 << 20)
    vmem_limit = int(min(max(vmem_bytes, 32 << 20), 56 << 20))

    out_shapes = (
        jax.ShapeDtypeStruct((num_splits, B, B), jnp.float32),
        jax.ShapeDtypeStruct((num_splits, B, 1), jnp.float32),
        jax.ShapeDtypeStruct((num_splits, B, 1), jnp.float32),
    )

    s_p, sq1_p, sq2_p = pl.pallas_call(
        kernel,
        out_shape=out_shapes,
        grid_spec=pltpu.PrefetchScalarGridSpec(
            num_scalar_prefetch=0,
            grid=(num_splits, cps),
            in_specs=[
                pl.BlockSpec((B, tk), in_map),   # D1 chunk (native dtype)
                pl.BlockSpec((B, tk), in_map),   # D2 chunk (native dtype)
            ],
            out_specs=[
                pl.BlockSpec((None, B, B), lambda c, k: (c, 0, 0)),
                pl.BlockSpec((None, B, 1), lambda c, k: (c, 0, 0)),
                pl.BlockSpec((None, B, 1), lambda c, k: (c, 0, 0)),
            ],
        ),
        compiler_params=pltpu.CompilerParams(
            dimension_semantics=("parallel", "arbitrary"),
            vmem_limit_bytes=vmem_limit,
        ),
        cost_estimate=pl.CostEstimate(
            flops=2 * B * B * N + 4 * B * N,
            transcendentals=0,
            bytes_accessed=2 * B * N * itemsize + num_splits * (B * B + 2 * B) * 4,
        ),
    )(d1f, d2f)

    # Tiny O(B^2) finalize in XLA: combine per-split partials, apply norms,
    # square, mean.  Eps is applied to each norm (matches the torch module).
    s = jnp.sum(s_p, axis=0)                                  # (B, B)
    n1 = jnp.sqrt(jnp.sum(sq1_p, axis=0)) + 1e-6              # (B, 1)
    n2 = jnp.sqrt(jnp.sum(sq2_p, axis=0)) + 1e-6              # (B, 1)
    g = s / (n1 * n2.T)                                       # == D1n @ D2n^T
    return jnp.mean(g * g)


def _diff_loss_ref(d1, d2):
    B = d1.shape[0]
    a = d1.reshape(B, -1).astype(jnp.float32)
    b = d2.reshape(B, -1).astype(jnp.float32)
    n1 = jnp.linalg.norm(a, axis=1, keepdims=True)
    n2 = jnp.linalg.norm(b, axis=1, keepdims=True)
    an = a / (n1 + 1e-6)
    bn = b / (n2 + 1e-6)
    g = jnp.dot(an, bn.T, precision=lax.Precision.HIGHEST)
    return jnp.mean(g * g)


if __name__ == "__main__":
    key = jax.random.PRNGKey(0)
    k1, k2, k3, k4 = jax.random.split(key, 4)

    # Case 1: f32 feature maps [B, C, H, W] as implied by the module forward.
    B, C, H, W = 2, 4, 16, 16
    D1 = jax.random.normal(k1, (B, C, H, W), dtype=jnp.float32)
    D2 = jax.random.normal(k2, (B, C, H, W), dtype=jnp.float32)
    out = diff_loss(D1, D2, use_pallas=True)     # force the Pallas path for the demo
    jax.block_until_ready(out)
    ref = _diff_loss_ref(D1, D2)
    np.testing.assert_allclose(np.asarray(out), np.asarray(ref), rtol=1e-4, atol=1e-6)

    # Case 2: multi-chunk reduction + 2-way split + phantom-chunk masking (forced tk).
    out2 = diff_loss(D1, D2, tk=384, use_pallas=True)
    jax.block_until_ready(out2)
    np.testing.assert_allclose(np.asarray(out2), np.asarray(ref), rtol=1e-4, atol=1e-6)

    # Case 3: native bf16 streaming with a ragged (non-multiple-of-128) feature dim.
    Bb, Cb, Hb, Wb = 4, 3, 20, 20
    D1b = jax.random.normal(k3, (Bb, Cb, Hb, Wb), dtype=jnp.float32).astype(jnp.bfloat16)
    D2b = jax.random.normal(k4, (Bb, Cb, Hb, Wb), dtype=jnp.float32).astype(jnp.bfloat16)
    out3 = diff_loss(D1b, D2b, use_pallas=True)
    jax.block_until_ready(out3)
    ref3 = _diff_loss_ref(D1b, D2b)
    np.testing.assert_allclose(np.asarray(out3), np.asarray(ref3), rtol=1e-4, atol=1e-6)

    print("KERNEL_OK")
</pallas_src>

<mosaic_0001>
module attributes {stable_mosaic.version = 11 : i64} {
  func.func @_diffloss_partial_kernel(%arg0: i32, %arg1: i32, %arg2: memref<2x1024xf32, #tpu.memory_space<vmem>>, %arg3: memref<2x1024xf32, #tpu.memory_space<vmem>>, %arg4: memref<1x2x2xf32, #tpu.memory_space<vmem>>, %arg5: memref<1x2x1xf32, #tpu.memory_space<vmem>>, %arg6: memref<1x2x1xf32, #tpu.memory_space<vmem>>) attributes {dimension_semantics = [#tpu.dimension_semantics<parallel>, #tpu.dimension_semantics<arbitrary>], iteration_bounds = array<i64: 1, 1>, scalar_prefetch = 0 : i64, scratch_operands = 0 : i64, tpu.core_type = #tpu.core_type<tc>, window_params = [{transform_indices = @transform_0, window_bounds = array<i64: 2, 1024>}, {transform_indices = @transform_1, window_bounds = array<i64: 2, 1024>}, {transform_indices = @transform_2, window_bounds = array<i64: 1, 2, 2>}, {transform_indices = @transform_3, window_bounds = array<i64: 1, 2, 1>}, {transform_indices = @transform_4, window_bounds = array<i64: 1, 2, 1>}]} {
    %c0_i32 = arith.constant 0 : i32
    %0 = arith.cmpi eq, %arg1, %c0_i32 : i32
    %1 = arith.extui %0 : i1 to i32
    %c0_i32_0 = arith.constant 0 : i32
    %2 = arith.cmpi ne, %1, %c0_i32_0 : i32
    scf.if %2 {
      %cst_24 = arith.constant 0.000000e+00 : f32
      %30 = vector.broadcast %cst_24 : f32 to vector<2x2xf32>
      %c0_25 = arith.constant 0 : index
      %c0_26 = arith.constant 0 : index
      %c0_27 = arith.constant 0 : index
      %31 = vector.load %arg4[%c0_25, %c0_26, %c0_27] : memref<1x2x2xf32, #tpu.memory_space<vmem>>, vector<1x2x2xf32>
      %32 = vector.shape_cast %31 : vector<1x2x2xf32> to vector<2x2xf32>
      %33 = vector.shape_cast %30 : vector<2x2xf32> to vector<1x2x2xf32>
      tpu.vector_store %arg4[%c0_25, %c0_26, %c0_27], %33 {strides = array<i32>} : memref<1x2x2xf32, #tpu.memory_space<vmem>>, vector<1x2x2xf32>,
      %cst_28 = arith.constant 0.000000e+00 : f32
      %34 = vector.broadcast %cst_28 : f32 to vector<2x1xf32>
      %c0_29 = arith.constant 0 : index
      %c0_30 = arith.constant 0 : index
      %c0_31 = arith.constant 0 : index
      %35 = vector.load %arg5[%c0_29, %c0_30, %c0_31] : memref<1x2x1xf32, #tpu.memory_space<vmem>>, vector<1x2x1xf32>
      %36 = vector.shape_cast %35 : vector<1x2x1xf32> to vector<2x1xf32>
      %37 = vector.shape_cast %34 : vector<2x1xf32> to vector<1x2x1xf32>
      tpu.vector_store %arg5[%c0_29, %c0_30, %c0_31], %37 {strides = array<i32>} : memref<1x2x1xf32, #tpu.memory_space<vmem>>, vector<1x2x1xf32>,
      %cst_32 = arith.constant 0.000000e+00 : f32
      %38 = vector.broadcast %cst_32 : f32 to vector<2x1xf32>
      %c0_33 = arith.constant 0 : index
      %c0_34 = arith.constant 0 : index
      %c0_35 = arith.constant 0 : index
      %39 = vector.load %arg6[%c0_33, %c0_34, %c0_35] : memref<1x2x1xf32, #tpu.memory_space<vmem>>, vector<1x2x1xf32>
      %40 = vector.shape_cast %39 : vector<1x2x1xf32> to vector<2x1xf32>
      %41 = vector.shape_cast %38 : vector<2x1xf32> to vector<1x2x1xf32>
      tpu.vector_store %arg6[%c0_33, %c0_34, %c0_35], %41 {strides = array<i32>} : memref<1x2x1xf32, #tpu.memory_space<vmem>>, vector<1x2x1xf32>,
    } else {
    }
    %c0 = arith.constant 0 : index
    %c0_1 = arith.constant 0 : index
    %3 = vector.load %arg2[%c0, %c0_1] : memref<2x1024xf32, #tpu.memory_space<vmem>>, vector<2x1024xf32>
    %c0_2 = arith.constant 0 : index
    %c0_3 = arith.constant 0 : index
    %4 = vector.load %arg3[%c0_2, %c0_3] : memref<2x1024xf32, #tpu.memory_space<vmem>>, vector<2x1024xf32>
    %c0_4 = arith.constant 0 : index
    %c0_5 = arith.constant 0 : index
    %c0_6 = arith.constant 0 : index
    %5 = vector.load %arg4[%c0_4, %c0_5, %c0_6] : memref<1x2x2xf32, #tpu.memory_space<vmem>>, vector<1x2x2xf32>
    %6 = vector.shape_cast %5 : vector<1x2x2xf32> to vector<2x2xf32>
    %cst = arith.constant dense<0.000000e+00> : vector<2x2xf32>
    %7 = tpu.matmul %3, %4, %cst {dimension_numbers = #tpu.dot_dimension_numbers<[1], [1], [0], [0], [0, 0, 1, 0], [], []>, precision = #tpu.contract_precision<fp32>} : vector<2x1024xf32>, vector<2x1024xf32>, vector<2x2xf32> -> vector<2x2xf32>
    %8 = arith.addf %6, %7 : vector<2x2xf32>
    %c0_7 = arith.constant 0 : index
    %c0_8 = arith.constant 0 : index
    %c0_9 = arith.constant 0 : index
    %9 = vector.load %arg4[%c0_7, %c0_8, %c0_9] : memref<1x2x2xf32, #tpu.memory_space<vmem>>, vector<1x2x2xf32>
    %10 = vector.shape_cast %9 : vector<1x2x2xf32> to vector<2x2xf32>
    %11 = vector.shape_cast %8 : vector<2x2xf32> to vector<1x2x2xf32>
    tpu.vector_store %arg4[%c0_7, %c0_8, %c0_9], %11 {strides = array<i32>} : memref<1x2x2xf32, #tpu.memory_space<vmem>>, vector<1x2x2xf32>,
    %c0_10 = arith.constant 0 : index
    %c0_11 = arith.constant 0 : index
    %c0_12 = arith.constant 0 : index
    %12 = vector.load %arg5[%c0_10, %c0_11, %c0_12] : memref<1x2x1xf32, #tpu.memory_space<vmem>>, vector<1x2x1xf32>
    %13 = vector.shape_cast %12 : vector<1x2x1xf32> to vector<2x1xf32>
    %14 = arith.mulf %3, %3 : vector<2x1024xf32>
    %cst_13 = arith.constant dense<0.000000e+00> : vector<2xf32>
    %15 = vector.multi_reduction <add>, %14, %cst_13 [1] : vector<2x1024xf32> to vector<2xf32>
    %16 = vector.shape_cast %15 : vector<2xf32> to vector<2x1xf32>
    %17 = arith.addf %13, %16 : vector<2x1xf32>
    %c0_14 = arith.constant 0 : index
    %c0_15 = arith.constant 0 : index
    %c0_16 = arith.constant 0 : index
    %18 = vector.load %arg5[%c0_14, %c0_15, %c0_16] : memref<1x2x1xf32, #tpu.memory_space<vmem>>, vector<1x2x1xf32>
    %19 = vector.shape_cast %18 : vector<1x2x1xf32> to vector<2x1xf32>
    %20 = vector.shape_cast %17 : vector<2x1xf32> to vector<1x2x1xf32>
    tpu.vector_store %arg5[%c0_14, %c0_15, %c0_16], %20 {strides = array<i32>} : memref<1x2x1xf32, #tpu.memory_space<vmem>>, vector<1x2x1xf32>,
    %c0_17 = arith.constant 0 : index
    %c0_18 = arith.constant 0 : index
    %c0_19 = arith.constant 0 : index
    %21 = vector.load %arg6[%c0_17, %c0_18, %c0_19] : memref<1x2x1xf32, #tpu.memory_space<vmem>>, vector<1x2x1xf32>
    %22 = vector.shape_cast %21 : vector<1x2x1xf32> to vector<2x1xf32>
    %23 = arith.mulf %4, %4 : vector<2x1024xf32>
    %cst_20 = arith.constant dense<0.000000e+00> : vector<2xf32>
    %24 = vector.multi_reduction <add>, %23, %cst_20 [1] : vector<2x1024xf32> to vector<2xf32>
    %25 = vector.shape_cast %24 : vector<2xf32> to vector<2x1xf32>
    %26 = arith.addf %22, %25 : vector<2x1xf32>
    %c0_21 = arith.constant 0 : index
    %c0_22 = arith.constant 0 : index
    %c0_23 = arith.constant 0 : index
    %27 = vector.load %arg6[%c0_21, %c0_22, %c0_23] : memref<1x2x1xf32, #tpu.memory_space<vmem>>, vector<1x2x1xf32>
    %28 = vector.shape_cast %27 : vector<1x2x1xf32> to vector<2x1xf32>
    %29 = vector.shape_cast %26 : vector<2x1xf32> to vector<1x2x1xf32>
    tpu.vector_store %arg6[%c0_21, %c0_22, %c0_23], %29 {strides = array<i32>} : memref<1x2x1xf32, #tpu.memory_space<vmem>>, vector<1x2x1xf32>,
    return
  }
  func.func @transform_0(%arg0: i32, %arg1: i32) -> (i32, i32) {
    %c1_i32 = arith.constant 1 : i32
    %0 = arith.muli %arg0, %c1_i32 : i32
    %1 = arith.addi %0, %arg1 : i32
    %c0_i32 = arith.constant 0 : i32
    %c0_i32_0 = arith.constant 0 : i32
    return %c0_i32, %1 : i32, i32
  }
  func.func @transform_1(%arg0: i32, %arg1: i32) -> (i32, i32) {
    %c1_i32 = arith.constant 1 : i32
    %0 = arith.muli %arg0, %c1_i32 : i32
    %1 = arith.addi %0, %arg1 : i32
    %c0_i32 = arith.constant 0 : i32
    %c0_i32_0 = arith.constant 0 : i32
    return %c0_i32, %1 : i32, i32
  }
  func.func @transform_2(%arg0: i32, %arg1: i32) -> (i32, i32, i32) {
    %c0_i32 = arith.constant 0 : i32
    %c0_i32_0 = arith.constant 0 : i32
    %c0_i32_1 = arith.constant 0 : i32
    return %arg0, %c0_i32, %c0_i32_0 : i32, i32, i32
  }
  func.func @transform_3(%arg0: i32, %arg1: i32) -> (i32, i32, i32) {
    %c0_i32 = arith.constant 0 : i32
    %c0_i32_0 = arith.constant 0 : i32
    %c0_i32_1 = arith.constant 0 : i32
    return %arg0, %c0_i32, %c0_i32_0 : i32, i32, i32
  }
  func.func @transform_4(%arg0: i32, %arg1: i32) -> (i32, i32, i32) {
    %c0_i32 = arith.constant 0 : i32
    %c0_i32_0 = arith.constant 0 : i32
    %c0_i32_1 = arith.constant 0 : i32
    return %arg0, %c0_i32, %c0_i32_0 : i32, i32, i32
  }
}

</mosaic_0001>

<llo_original>
// kernel: tpu_custom_call.1
$region0: #{tpu_custom_call.1}
  #allocation0 [shape = 'u32[]', space=smem, size = 0x4, offset = 0x4, fixed_abs, tag = 'smem constant byte address 0x4 - core index']
  #allocation1 [shape = 'u32[144,128]{1,0:T(1,128)}', space=vmem, size = 0x12000, scoped, tag = 'internal scratch']
  %s0 = inlined_call_operand.hbm [shape: f32[2,1024], index: 0, kind: input, shape index: {}]
  %s1 = inlined_call_operand.hbm [shape: f32[2,1024], index: 1, kind: input, shape index: {}]
  %s2 = inlined_call_operand.hbm [shape: f32[1,2,2], index: 2, kind: output, shape index: {0}]
  %s3 = inlined_call_operand.vmem [shape: f32[1,2,1], index: 3, kind: output, shape index: {1}]
  %s4 = inlined_call_operand.vmem [shape: f32[1,2,1], index: 4, kind: output, shape index: {2}]
  %5 = xla_tuple %s2, %s3, %s4
  %s6 = sld [smem:[#allocation0]]
  $region46: #{tpu_custom_call.1} parent=0
    _
  %s8 = ssub.s32 1, %s6
  %s9 = scalar_select 0, %s8, %s6
  $region1: #{tpu_custom_call.1} parent=0
    #allocation2 [shape = 'u8[8192]{0}', space=vmem, size = 0x2000, scoped, tag = 'input window, operand 0, single buffered']
    #allocation3 [shape = 's32[1]{0}', space=sflag, size = 0x4, scoped, tag = 'scoped memory for tpu_custom_call.1']
    #allocation4 [shape = 's32[1]{0}', space=sflag, size = 0x4, scoped, tag = 'scoped memory for tpu_custom_call.1']
    #allocation5 [shape = 'u8[8192]{0}', space=vmem, size = 0x2000, scoped, tag = 'input window, operand 1, single buffered']
    #allocation6 [shape = 's32[1]{0}', space=sflag, size = 0x4, scoped, tag = 'scoped memory for tpu_custom_call.1']
    #allocation7 [shape = 'u8[1024]{0}', space=vmem, size = 0x400, scoped, tag = 'output window, operand 0, single buffered']
    %10 = vsyncpa [#allocation3], 0
    %11 = vsyncpa [#allocation6], 0
    %12 = vsyncpa [#allocation4], 0
    // Predicated region
    $region2: #{tpu_custom_call.1} parent=1 // pred_check
      _
    $region3: #{tpu_custom_call.1} parent=1 // pred_check_branch
      %14 = sbr.rel (0) target = $region5
    $region4: #{tpu_custom_call.1} parent=1 // pred_region
      %s15 = sadd.s32 0, 0
      %s16 = smul.u32 8, %s15
      %s18 = ssub.s32 256, 256
      %19 = vsyncadd [#allocation3], %s18
      %s20 = smul.addr %s16, 32
      %s21 = scalar_lea.hbm %s0, %s20
      %s23 = sshll.u32 [#allocation2], 4
      %s24 = int_to_ptr.vmem [resolvable:$true] %s23
      %26 = dma.hbm_to_vmem [thread:$0]  %s21, 256, %s24, [#allocation3]
    $region5: #{tpu_custom_call.1} parent=1 // pred_fallthru
      _
    // Predicated region
    $region6: #{tpu_custom_call.1} parent=1 // pred_check
      _
    $region7: #{tpu_custom_call.1} parent=1 // pred_check_branch
      %28 = sbr.rel (0) target = $region9
    $region8: #{tpu_custom_call.1} parent=1 // pred_region
      %s29 = sadd.s32 0, 0
      %s30 = smul.u32 8, %s29
      %s32 = ssub.s32 256, 256
      %33 = vsyncadd [#allocation6], %s32
      %s34 = smul.addr %s30, 32
      %s35 = scalar_lea.hbm %s1, %s34
      %s37 = sshll.u32 [#allocation5], 4
      %s38 = int_to_ptr.vmem [resolvable:$true] %s37
      %40 = dma.hbm_to_vmem [thread:$0]  %s35, 256, %s38, [#allocation6]
    $region9: #{tpu_custom_call.1} parent=1 // pred_fallthru
      _
    // Predicated region
    $region10: #{tpu_custom_call.1} parent=1 // pred_check
      _
    $region11: #{tpu_custom_call.1} parent=1 // pred_check_branch
      %42 = sbr.rel (0) target = $region13
    $region12: #{tpu_custom_call.1} parent=1 // pred_region
      %43 = dma.done [#allocation3], 256
    $region13: #{tpu_custom_call.1} parent=1 // pred_fallthru
      _
    // Predicated region
    $region14: #{tpu_custom_call.1} parent=1 // pred_check
      _
    $region15: #{tpu_custom_call.1} parent=1 // pred_check_branch
      %45 = sbr.rel (0) target = $region17
    $region16: #{tpu_custom_call.1} parent=1 // pred_region
      %46 = dma.done [#allocation6], 256
    $region17: #{tpu_custom_call.1} parent=1 // pred_fallthru
      _
    %s47 = sadd.s32 0, 0
    %s48 = smul.u32 8, %s47
    %s49 = sadd.s32 0, 0
    %s50 = smul.u32 8, %s49
    %p51 = scmp.eq.s32.totalorder 0, 0
    // Predicated region
    $region18: #{tpu_custom_call.1} parent=1 // pred_check
      %p52 = pneg %p51
    $region19: #{tpu_custom_call.1} parent=1 // pred_check_branch
      %54 = sbr.rel (%p52) target = $region21
    $region20: #{tpu_custom_call.1} parent=1 // pred_region
      %vm55 = vcmask 9216
      %56 = vst.msk [vmem:[#allocation7] sm:$0x3] %vm55, 0.0
      %vm57 = vcmask 1024
      %58 = vst.msk [vmem:[%s3] sm:$0x3] %vm57, 0.0
      %59 = vst.msk [vmem:[%s4] sm:$0x3] %vm57, 0.0
    $region21: #{tpu_custom_call.1} parent=1 // pred_fallthru
      _
    %v60 = vld [vmem:[#allocation2] sm:$0xff]
    %v61 = vld [vmem:[#allocation2 + $0x8] sm:$0xff]
    %v62 = vld [vmem:[#allocation5] sm:$0xff]
    %v63 = vld [vmem:[#allocation5 + $0x8] sm:$0xff]
    %v64 = vld [vmem:[#allocation7] sm:$0x3]
    %v67 = vcombine.high %v60, %v60
    %v69 = vunpack.c.l.s4 1983009808
    %v70 = vunpack.c.0.s8 %v69
    %v71 = vlaneseq
    %v72 = vshrl.u32 %v71, 7
    %v73 = vsub.s32 %v70, %v72
    %v74 = vrot.slane %v60, %v73
    %v76 = vunpack.c.l.s4 1983009808
    %v77 = vunpack.c.0.s8 %v76
    %v78 = vlaneseq
    %v79 = vshrl.u32 %v78, 7
    %v80 = vsub.s32 %v77, %v79
    %v81 = vrot.slane %v67, %v80
    %v82 = vcombine.high %v74, %v74
    %v83 = vcombine.high %v81, %v81
    %v84 = vcombine.high %v61, %v61
    %v86 = vunpack.c.l.s4 1983009808
    %v87 = vunpack.c.0.s8 %v86
    %v88 = vlaneseq
    %v89 = vshrl.u32 %v88, 7
    %v90 = vsub.s32 %v87, %v89
    %v91 = vrot.slane %v61, %v90
    %v93 = vunpack.c.l.s4 1983009808
    %v94 = vunpack.c.0.s8 %v93
    %v95 = vlaneseq
    %v96 = vshrl.u32 %v95, 7
    %v97 = vsub.s32 %v94, %v96
    %v98 = vrot.slane %v84, %v97
    %v99 = vcombine.high %v91, %v91
    %v100 = vcombine.high %v98, %v98
    %v111 = vcombine.high %v62, %v62
    %v113 = vunpack.c.l.s4 1983009808
    %v114 = vunpack.c.0.s8 %v113
    %v115 = vlaneseq
    %v116 = vshrl.u32 %v115, 7
    %v117 = vsub.s32 %v114, %v116
    %v118 = vrot.slane %v62, %v117
    %v120 = vunpack.c.l.s4 1983009808
    %v121 = vunpack.c.0.s8 %v120
    %v122 = vlaneseq
    %v123 = vshrl.u32 %v122, 7
    %v124 = vsub.s32 %v121, %v123
    %v125 = vrot.slane %v111, %v124
    %v126 = vcombine.high %v118, %v118
    %v127 = vcombine.high %v125, %v125
    %v128 = vcombine.high %v63, %v63
    %v130 = vunpack.c.l.s4 1983009808
    %v131 = vunpack.c.0.s8 %v130
    %v132 = vlaneseq
    %v133 = vshrl.u32 %v132, 7
    %v134 = vsub.s32 %v131, %v133
    %v135 = vrot.slane %v63, %v134
    %v137 = vunpack.c.l.s4 1983009808
    %v138 = vunpack.c.0.s8 %v137
    %v139 = vlaneseq
    %v140 = vshrl.u32 %v139, 7
    %v141 = vsub.s32 %v138, %v140
    %v142 = vrot.slane %v128, %v141
    %v143 = vcombine.high %v135, %v135
    %v144 = vcombine.high %v142, %v142
    %v153 = vand.u32 %v126, 4294901760
    %154 = vmatprep.subr.mxu0 %v153
    %v155 = vand.u32 %v118, 4294901760
    %156 = vmatpush1.xpose.msra.mxu0 %v155
    %157 = vmatprep.subr.mxu0 0.0
    %158 = vmatpush1.xpose.msra.mxu0 0.0
    %159 = vmatprep.subr.mxu0 0.0
    %160 = vmatpush1.xpose.msra.mxu0 0.0
    %161 = vmatprep.subr.mxu0 0.0
    %162 = vmatpush1.xpose.msra.mxu0 0.0
    %163 = vmatprep.subr.mxu0 0.0
    %164 = vmatpush1.xpose.msra.mxu0 0.0
    %165 = vmatprep.subr.mxu0 0.0
    %166 = vmatpush1.xpose.msra.mxu0 0.0
    %167 = vmatprep.subr.mxu0 0.0
    %168 = vmatpush1.xpose.msra.mxu0 0.0
    %169 = vmatprep.subr.mxu0 0.0
    %170 = vmatpush1.xpose.msra.mxu0 0.0
    %171 = vmatprep.subr.mxu0 0.0
    %172 = vmatpush1.xpose.msra.mxu0 0.0
    %173 = vmatprep.subr.mxu0 0.0
    %174 = vmatpush1.xpose.msra.mxu0 0.0
    %175 = vmatprep.subr.mxu0 0.0
    %176 = vmatpush1.xpose.msra.mxu0 0.0
    %177 = vmatprep.subr.mxu0 0.0
    %178 = vmatpush1.xpose.msra.mxu0 0.0
    %179 = vmatprep.subr.mxu0 0.0
    %180 = vmatpush1.xpose.msra.mxu0 0.0
    %181 = vmatprep.subr.mxu0 0.0
    %182 = vmatpush1.xpose.msra.mxu0 0.0
    %183 = vmatprep.subr.mxu0 0.0
    %184 = vmatpush1.xpose.msra.mxu0 0.0
    %185 = vmatprep.subr.mxu0 0.0
    %186 = vmatpush1.xpose.msra.mxu0 0.0
    %187 = vmatprep.subr.mxu0 0.0
    %188 = vmatpush1.xpose.msra.mxu0 0.0
    %189 = vmatprep.subr.mxu0 0.0
    %190 = vmatpush1.xpose.msra.mxu0 0.0
    %191 = vmatprep.subr.mxu0 0.0
    %192 = vmatpush1.xpose.msra.mxu0 0.0
    %193 = vmatprep.subr.mxu0 0.0
    %194 = vmatpush1.xpose.msra.mxu0 0.0
    %195 = vmatprep.subr.mxu0 0.0
    %196 = vmatpush1.xpose.msra.mxu0 0.0
    %197 = vmatprep.subr.mxu0 0.0
    %198 = vmatpush1.xpose.msra.mxu0 0.0
    %199 = vmatprep.subr.mxu0 0.0
    %200 = vmatpush1.xpose.msra.mxu0 0.0
    %201 = vmatprep.subr.mxu0 0.0
    %202 = vmatpush1.xpose.msra.mxu0 0.0
    %203 = vmatprep.subr.mxu0 0.0
    %204 = vmatpush1.xpose.msra.mxu0 0.0
    %205 = vmatprep.subr.mxu0 0.0
    %206 = vmatpush1.xpose.msra.mxu0 0.0
    %207 = vmatprep.subr.mxu0 0.0
    %208 = vmatpush1.xpose.msra.mxu0 0.0
    %209 = vmatprep.subr.mxu0 0.0
    %210 = vmatpush1.xpose.msra.mxu0 0.0
    %211 = vmatprep.subr.mxu0 0.0
    %212 = vmatpush1.xpose.msra.mxu0 0.0
    %213 = vmatprep.subr.mxu0 0.0
    %214 = vmatpush1.xpose.msra.mxu0 0.0
    %215 = vmatprep.subr.mxu0 0.0
    %216 = vmatpush1.xpose.msra.mxu0 0.0
    %217 = vmatprep.subr.mxu0 0.0
    %218 = vmatpush1.xpose.msra.mxu0 0.0
    %v219 = vand.u32 %v82, 4294901760
    %v220 = vsub.f32 %v82, %v219
    %v221 = vand.u32 %v220, 4294901760
    %v222 = vsub.f32 %v220, %v221
    %v223 = vand.u32 %v222, 4294901760
    %224 = vmatprep.mubr.f32.mxu0 %v223
    %v225 = vand.u32 %v74, 4294901760
    %v226 = vsub.f32 %v74, %v225
    %v227 = vand.u32 %v226, 4294901760
    %v228 = vsub.f32 %v226, %v227
    %v229 = vand.u32 %v228, 4294901760
    %230 = vmatmul.mubr.f32.gmra.mrb[0].mxu0 %v229
    %v231 = vpop.f32.mrb[0].mxu0
    %v232 = vadd.f32 0.0, %v231
    %v233 = vpop.f32.mrb[0].mxu0
    %234 = vdwg.mxu0
    %v235 = vand.u32 %v126, 4294901760
    %v236 = vsub.f32 %v126, %v235
    %v237 = vand.u32 %v236, 4294901760
    %v238 = vsub.f32 %v236, %v237
    %v239 = vand.u32 %v238, 4294901760
    %240 = vmatprep.subr.mxu0 %v239
    %v241 = vand.u32 %v118, 4294901760
    %v242 = vsub.f32 %v118, %v241
    %v243 = vand.u32 %v242, 4294901760
    %v244 = vsub.f32 %v242, %v243
    %v245 = vand.u32 %v244, 4294901760
    %246 = vmatpush1.xpose.msra.mxu0 %v245
    %247 = vmatprep.subr.mxu0 0.0
    %248 = vmatpush1.xpose.msra.mxu0 0.0
    %249 = vmatprep.subr.mxu0 0.0
    %250 = vmatpush1.xpose.msra.mxu0 0.0
    %251 = vmatprep.subr.mxu0 0.0
    %252 = vmatpush1.xpose.msra.mxu0 0.0
    %253 = vmatprep.subr.mxu0 0.0
    %254 = vmatpush1.xpose.msra.mxu0 0.0
    %255 = vmatprep.subr.mxu0 0.0
    %256 = vmatpush1.xpose.msra.mxu0 0.0
    %257 = vmatprep.subr.mxu0 0.0
    %258 = vmatpush1.xpose.msra.mxu0 0.0
    %259 = vmatprep.subr.mxu0 0.0
    %260 = vmatpush1.xpose.msra.mxu0 0.0
    %261 = vmatprep.subr.mxu0 0.0
    %262 = vmatpush1.xpose.msra.mxu0 0.0
    %263 = vmatprep.subr.mxu0 0.0
    %264 = vmatpush1.xpose.msra.mxu0 0.0
    %265 = vmatprep.subr.mxu0 0.0
    %266 = vmatpush1.xpose.msra.mxu0 0.0
    %267 = vmatprep.subr.mxu0 0.0
    %268 = vmatpush1.xpose.msra.mxu0 0.0
    %269 = vmatprep.subr.mxu0 0.0
    %270 = vmatpush1.xpose.msra.mxu0 0.0
    %271 = vmatprep.subr.mxu0 0.0
    %272 = vmatpush1.xpose.msra.mxu0 0.0
    %273 = vmatprep.subr.mxu0 0.0
    %274 = vmatpush1.xpose.msra.mxu0 0.0
    %275 = vmatprep.subr.mxu0 0.0
    %276 = vmatpush1.xpose.msra.mxu0 0.0
    %277 = vmatprep.subr.mxu0 0.0
    %278 = vmatpush1.xpose.msra.mxu0 0.0
    %279 = vmatprep.subr.mxu0 0.0
    %280 = vmatpush1.xpose.msra.mxu0 0.0
    %281 = vmatprep.subr.mxu0 0.0
    %282 = vmatpush1.xpose.msra.mxu0 0.0
    %283 = vmatprep.subr.mxu0 0.0
    %284 = vmatpush1.xpose.msra.mxu0 0.0
    %285 = vmatprep.subr.mxu0 0.0
    %286 = vmatpush1.xpose.msra.mxu0 0.0
    %287 = vmatprep.subr.mxu0 0.0
    %288 = vmatpush1.xpose.msra.mxu0 0.0
    %289 = vmatprep.subr.mxu0 0.0
    %290 = vmatpush1.xpose.msra.mxu0 0.0
    %291 = vmatprep.subr.mxu0 0.0
    %292 = vmatpush1.xpose.msra.mxu0 0.0
    %293 = vmatprep.subr.mxu0 0.0
    %294 = vmatpush1.xpose.msra.mxu0 0.0
    %295 = vmatprep.subr.mxu0 0.0
    %296 = vmatpush1.xpose.msra.mxu0 0.0
    %297 = vmatprep.subr.mxu0 0.0
    %298 = vmatpush1.xpose.msra.mxu0 0.0
    %299 = vmatprep.subr.mxu0 0.0
    %300 = vmatpush1.xpose.msra.mxu0 0.0
    %301 = vmatprep.subr.mxu0 0.0
    %302 = vmatpush1.xpose.msra.mxu0 0.0
    %303 = vmatprep.subr.mxu0 0.0
    %304 = vmatpush1.xpose.msra.mxu0 0.0
    %305 = vmatprep.subr.mxu0 0.0
    %306 = vmatpush1.xpose.msra.mxu0 0.0
    %307 = vmatprep.subr.mxu0 0.0
    %308 = vmatpush1.xpose.msra.mxu0 0.0
    %v309 = vand.u32 %v82, 4294901760
    %310 = vmatprep.mubr.f32.mxu0 %v309
    %v311 = vand.u32 %v74, 4294901760
    %312 = vmatmul.mubr.f32.gmra.mrb[0].mxu0 %v311
    %v313 = vpop.f32.mrb[0].mxu0
    %v314 = vadd.f32 %v232, %v313
    %v315 = vpop.f32.mrb[0].mxu0
    %316 = vdwg.mxu0
    %v317 = vand.u32 %v126, 4294901760
    %v318 = vsub.f32 %v126, %v317
    %319 = vmatprep.subr.mxu0 %v318
    %v320 = vand.u32 %v118, 4294901760
    %v321 = vsub.f32 %v118, %v320
    %322 = vmatpush1.xpose.msra.mxu0 %v321
    %323 = vmatprep.subr.mxu0 0.0
    %324 = vmatpush1.xpose.msra.mxu0 0.0
    %325 = vmatprep.subr.mxu0 0.0
    %326 = vmatpush1.xpose.msra.mxu0 0.0
    %327 = vmatprep.subr.mxu0 0.0
    %328 = vmatpush1.xpose.msra.mxu0 0.0
    %329 = vmatprep.subr.mxu0 0.0
    %330 = vmatpush1.xpose.msra.mxu0 0.0
    %331 = vmatprep.subr.mxu0 0.0
    %332 = vmatpush1.xpose.msra.mxu0 0.0
    %333 = vmatprep.subr.mxu0 0.0
    %334 = vmatpush1.xpose.msra.mxu0 0.0
    %335 = vmatprep.subr.mxu0 0.0
    %336 = vmatpush1.xpose.msra.mxu0 0.0
    %337 = vmatprep.subr.mxu0 0.0
    %338 = vmatpush1.xpose.msra.mxu0 0.0
    %339 = vmatprep.subr.mxu0 0.0
    %340 = vmatpush1.xpose.msra.mxu0 0.0
    %341 = vmatprep.subr.mxu0 0.0
    %342 = vmatpush1.xpose.msra.mxu0 0.0
    %343 = vmatprep.subr.mxu0 0.0
    %344 = vmatpush1.xpose.msra.mxu0 0.0
    %345 = vmatprep.subr.mxu0 0.0
    %346 = vmatpush1.xpose.msra.mxu0 0.0
    %347 = vmatprep.subr.mxu0 0.0
    %348 = vmatpush1.xpose.msra.mxu0 0.0
    %349 = vmatprep.subr.mxu0 0.0
    %350 = vmatpush1.xpose.msra.mxu0 0.0
    %351 = vmatprep.subr.mxu0 0.0
    %352 = vmatpush1.xpose.msra.mxu0 0.0
    %353 = vmatprep.subr.mxu0 0.0
    %354 = vmatpush1.xpose.msra.mxu0 0.0
    %355 = vmatprep.subr.mxu0 0.0
    %356 = vmatpush1.xpose.msra.mxu0 0.0
    %357 = vmatprep.subr.mxu0 0.0
    %358 = vmatpush1.xpose.msra.mxu0 0.0
    %359 = vmatprep.subr.mxu0 0.0
    %360 = vmatpush1.xpose.msra.mxu0 0.0
    %361 = vmatprep.subr.mxu0 0.0
    %362 = vmatpush1.xpose.msra.mxu0 0.0
    %363 = vmatprep.subr.mxu0 0.0
    %364 = vmatpush1.xpose.msra.mxu0 0.0
    %365 = vmatprep.subr.mxu0 0.0
    %366 = vmatpush1.xpose.msra.mxu0 0.0
    %367 = vmatprep.subr.mxu0 0.0
    %368 = vmatpush1.xpose.msra.mxu0 0.0
    %369 = vmatprep.subr.mxu0 0.0
    %370 = vmatpush1.xpose.msra.mxu0 0.0
    %371 = vmatprep.subr.mxu0 0.0
    %372 = vmatpush1.xpose.msra.mxu0 0.0
    %373 = vmatprep.subr.mxu0 0.0
    %374 = vmatpush1.xpose.msra.mxu0 0.0
    %375 = vmatprep.subr.mxu0 0.0
    %376 = vmatpush1.xpose.msra.mxu0 0.0
    %377 = vmatprep.subr.mxu0 0.0
    %378 = vmatpush1.xpose.msra.mxu0 0.0
    %379 = vmatprep.subr.mxu0 0.0
    %380 = vmatpush1.xpose.msra.mxu0 0.0
    %381 = vmatprep.subr.mxu0 0.0
    %382 = vmatpush1.xpose.msra.mxu0 0.0
    %383 = vmatprep.subr.mxu0 0.0
    %384 = vmatpush1.xpose.msra.mxu0 0.0
    %v385 = vand.u32 %v82, 4294901760
    %v386 = vsub.f32 %v82, %v385
    %387 = vmatprep.mubr.f32.mxu0 %v386
    %v388 = vand.u32 %v74, 4294901760
    %v389 = vsub.f32 %v74, %v388
    %390 = vmatmul.mubr.f32.gmra.mrb[0].mxu0 %v389
    %v391 = vpop.f32.mrb[0].mxu0
    %v392 = vadd.f32 %v314, %v391
    %v393 = vpop.f32.mrb[0].mxu0
    %394 = vdwg.mxu0
    %v395 = vand.u32 %v126, 4294901760
    %396 = vmatprep.subr.mxu0 %v395
    %v397 = vand.u32 %v118, 4294901760
    %398 = vmatpush1.xpose.msra.mxu0 %v397
    %399 = vmatprep.subr.mxu0 0.0
    %400 = vmatpush1.xpose.msra.mxu0 0.0
    %401 = vmatprep.subr.mxu0 0.0
    %402 = vmatpush1.xpose.msra.mxu0 0.0
    %403 = vmatprep.subr.mxu0 0.0
    %404 = vmatpush1.xpose.msra.mxu0 0.0
    %405 = vmatprep.subr.mxu0 0.0
    %406 = vmatpush1.xpose.msra.mxu0 0.0
    %407 = vmatprep.subr.mxu0 0.0
    %408 = vmatpush1.xpose.msra.mxu0 0.0
    %409 = vmatprep.subr.mxu0 0.0
    %410 = vmatpush1.xpose.msra.mxu0 0.0
    %411 = vmatprep.subr.mxu0 0.0
    %412 = vmatpush1.xpose.msra.mxu0 0.0
    %413 = vmatprep.subr.mxu0 0.0
    %414 = vmatpush1.xpose.msra.mxu0 0.0
    %415 = vmatprep.subr.mxu0 0.0
    %416 = vmatpush1.xpose.msra.mxu0 0.0
    %417 = vmatprep.subr.mxu0 0.0
    %418 = vmatpush1.xpose.msra.mxu0 0.0
    %419 = vmatprep.subr.mxu0 0.0
    %420 = vmatpush1.xpose.msra.mxu0 0.0
    %421 = vmatprep.subr.mxu0 0.0
    %422 = vmatpush1.xpose.msra.mxu0 0.0
    %423 = vmatprep.subr.mxu0 0.0
    %424 = vmatpush1.xpose.msra.mxu0 0.0
    %425 = vmatprep.subr.mxu0 0.0
    %426 = vmatpush1.xpose.msra.mxu0 0.0
    %427 = vmatprep.subr.mxu0 0.0
    %428 = vmatpush1.xpose.msra.mxu0 0.0
    %429 = vmatprep.subr.mxu0 0.0
    %430 = vmatpush1.xpose.msra.mxu0 0.0
    %431 = vmatprep.subr.mxu0 0.0
    %432 = vmatpush1.xpose.msra.mxu0 0.0
    %433 = vmatprep.subr.mxu0 0.0
    %434 = vmatpush1.xpose.msra.mxu0 0.0
    %435 = vmatprep.subr.mxu0 0.0
    %436 = vmatpush1.xpose.msra.mxu0 0.0
    %437 = vmatprep.subr.mxu0 0.0
    %438 = vmatpush1.xpose.msra.mxu0 0.0
    %439 = vmatprep.subr.mxu0 0.0
    %440 = vmatpush1.xpose.msra.mxu0 0.0
    %441 = vmatprep.subr.mxu0 0.0
    %442 = vmatpush1.xpose.msra.mxu0 0.0
    %443 = vmatprep.subr.mxu0 0.0
    %444 = vmatpush1.xpose.msra.mxu0 0.0
    %445 = vmatprep.subr.mxu0 0.0
    %446 = vmatpush1.xpose.msra.mxu0 0.0
    %447 = vmatprep.subr.mxu0 0.0
    %448 = vmatpush1.xpose.msra.mxu0 0.0
    %449 = vmatprep.subr.mxu0 0.0
    %450 = vmatpush1.xpose.msra.mxu0 0.0
    %451 = vmatprep.subr.mxu0 0.0
    %452 = vmatpush1.xpose.msra.mxu0 0.0
    %453 = vmatprep.subr.mxu0 0.0
    %454 = vmatpush1.xpose.msra.mxu0 0.0
    %455 = vmatprep.subr.mxu0 0.0
    %456 = vmatpush1.xpose.msra.mxu0 0.0
    %457 = vmatprep.subr.mxu0 0.0
    %458 = vmatpush1.xpose.msra.mxu0 0.0
    %459 = vmatprep.subr.mxu0 0.0
    %460 = vmatpush1.xpose.msra.mxu0 0.0
    %v461 = vand.u32 %v82, 4294901760
    %v462 = vsub.f32 %v82, %v461
    %v463 = vand.u32 %v462, 4294901760
    %464 = vmatprep.mubr.f32.mxu0 %v463
    %v465 = vand.u32 %v74, 4294901760
    %v466 = vsub.f32 %v74, %v465
    %v467 = vand.u32 %v466, 4294901760
    %468 = vmatmul.mubr.f32.gmra.mrb[0].mxu0 %v467
    %v469 = vpop.f32.mrb[0].mxu0
    %v470 = vadd.f32 %v392, %v469
    %v471 = vpop.f32.mrb[0].mxu0
    %472 = vdwg.mxu0
    %v473 = vand.u32 %v126, 4294901760
    %v474 = vsub.f32 %v126, %v473
    %v475 = vand.u32 %v474, 4294901760
    %476 = vmatprep.subr.mxu0 %v475
    %v477 = vand.u32 %v118, 4294901760
    %v478 = vsub.f32 %v118, %v477
    %v479 = vand.u32 %v478, 4294901760
    %480 = vmatpush1.xpose.msra.mxu0 %v479
    %481 = vmatprep.subr.mxu0 0.0
    %482 = vmatpush1.xpose.msra.mxu0 0.0
    %483 = vmatprep.subr.mxu0 0.0
    %484 = vmatpush1.xpose.msra.mxu0 0.0
    %485 = vmatprep.subr.mxu0 0.0
    %486 = vmatpush1.xpose.msra.mxu0 0.0
    %487 = vmatprep.subr.mxu0 0.0
    %488 = vmatpush1.xpose.msra.mxu0 0.0
    %489 = vmatprep.subr.mxu0 0.0
    %490 = vmatpush1.xpose.msra.mxu0 0.0
    %491 = vmatprep.subr.mxu0 0.0
    %492 = vmatpush1.xpose.msra.mxu0 0.0
    %493 = vmatprep.subr.mxu0 0.0
    %494 = vmatpush1.xpose.msra.mxu0 0.0
    %495 = vmatprep.subr.mxu0 0.0
    %496 = vmatpush1.xpose.msra.mxu0 0.0
    %497 = vmatprep.subr.mxu0 0.0
    %498 = vmatpush1.xpose.msra.mxu0 0.0
    %499 = vmatprep.subr.mxu0 0.0
    %500 = vmatpush1.xpose.msra.mxu0 0.0
    %501 = vmatprep.subr.mxu0 0.0
    %502 = vmatpush1.xpose.msra.mxu0 0.0
    %503 = vmatprep.subr.mxu0 0.0
    %504 = vmatpush1.xpose.msra.mxu0 0.0
    %505 = vmatprep.subr.mxu0 0.0
    %506 = vmatpush1.xpose.msra.mxu0 0.0
    %507 = vmatprep.subr.mxu0 0.0
    %508 = vmatpush1.xpose.msra.mxu0 0.0
    %509 = vmatprep.subr.mxu0 0.0
    %510 = vmatpush1.xpose.msra.mxu0 0.0
    %511 = vmatprep.subr.mxu0 0.0
    %512 = vmatpush1.xpose.msra.mxu0 0.0
    %513 = vmatprep.subr.mxu0 0.0
    %514 = vmatpush1.xpose.msra.mxu0 0.0
    %515 = vmatprep.subr.mxu0 0.0
    %516 = vmatpush1.xpose.msra.mxu0 0.0
    %517 = vmatprep.subr.mxu0 0.0
    %518 = vmatpush1.xpose.msra.mxu0 0.0
    %519 = vmatprep.subr.mxu0 0.0
    %520 = vmatpush1.xpose.msra.mxu0 0.0
    %521 = vmatprep.subr.mxu0 0.0
    %522 = vmatpush1.xpose.msra.mxu0 0.0
    %523 = vmatprep.subr.mxu0 0.0
    %524 = vmatpush1.xpose.msra.mxu0 0.0
    %525 = vmatprep.subr.mxu0 0.0
    %526 = vmatpush1.xpose.msra.mxu0 0.0
    %527 = vmatprep.subr.mxu0 0.0
    %528 = vmatpush1.xpose.msra.mxu0 0.0
    %529 = vmatprep.subr.mxu0 0.0
    %530 = vmatpush1.xpose.msra.mxu0 0.0
    %531 = vmatprep.subr.mxu0 0.0
    %532 = vmatpush1.xpose.msra.mxu0 0.0
    %533 = vmatprep.subr.mxu0 0.0
    %534 = vmatpush1.xpose.msra.mxu0 0.0
    %535 = vmatprep.subr.mxu0 0.0
    %536 = vmatpush1.xpose.msra.mxu0 0.0
    %537 = vmatprep.subr.mxu0 0.0
    %538 = vmatpush1.xpose.msra.mxu0 0.0
    %539 = vmatprep.subr.mxu0 0.0
    %540 = vmatpush1.xpose.msra.mxu0 0.0
    %541 = vmatprep.subr.mxu0 0.0
    %542 = vmatpush1.xpose.msra.mxu0 0.0
    %v543 = vand.u32 %v82, 4294901760
    %544 = vmatprep.mubr.f32.mxu0 %v543
    %v545 = vand.u32 %v74, 4294901760
    %546 = vmatmul.mubr.f32.gmra.mrb[0].mxu0 %v545
    %v547 = vpop.f32.mrb[0].mxu0
    %v548 = vadd.f32 %v470, %v547
    %v549 = vpop.f32.mrb[0].mxu0
    %550 = vdwg.mxu0
    %v551 = vand.u32 %v126, 4294901760
    %552 = vmatprep.subr.mxu0 %v551
    %v553 = vand.u32 %v118, 4294901760
    %554 = vmatpush1.xpose.msra.mxu0 %v553
    %555 = vmatprep.subr.mxu0 0.0
    %556 = vmatpush1.xpose.msra.mxu0 0.0
    %557 = vmatprep.subr.mxu0 0.0
    %558 = vmatpush1.xpose.msra.mxu0 0.0
    %559 = vmatprep.subr.mxu0 0.0
    %560 = vmatpush1.xpose.msra.mxu0 0.0
    %561 = vmatprep.subr.mxu0 0.0
    %562 = vmatpush1.xpose.msra.mxu0 0.0
    %563 = vmatprep.subr.mxu0 0.0
    %564 = vmatpush1.xpose.msra.mxu0 0.0
    %565 = vmatprep.subr.mxu0 0.0
    %566 = vmatpush1.xpose.msra.mxu0 0.0
    %567 = vmatprep.subr.mxu0 0.0
    %568 = vmatpush1.xpose.msra.mxu0 0.0
    %569 = vmatprep.subr.mxu0 0.0
    %570 = vmatpush1.xpose.msra.mxu0 0.0
    %571 = vmatprep.subr.mxu0 0.0
    %572 = vmatpush1.xpose.msra.mxu0 0.0
    %573 = vmatprep.subr.mxu0 0.0
    %574 = vmatpush1.xpose.msra.mxu0 0.0
    %575 = vmatprep.subr.mxu0 0.0
    %576 = vmatpush1.xpose.msra.mxu0 0.0
    %577 = vmatprep.subr.mxu0 0.0
    %578 = vmatpush1.xpose.msra.mxu0 0.0
    %579 = vmatprep.subr.mxu0 0.0
    %580 = vmatpush1.xpose.msra.mxu0 0.0
    %581 = vmatprep.subr.mxu0 0.0
    %582 = vmatpush1.xpose.msra.mxu0 0.0
    %583 = vmatprep.subr.mxu0 0.0
    %584 = vmatpush1.xpose.msra.mxu0 0.0
    %585 = vmatprep.subr.mxu0 0.0
    %586 = vmatpush1.xpose.msra.mxu0 0.0
    %587 = vmatprep.subr.mxu0 0.0
    %588 = vmatpush1.xpose.msra.mxu0 0.0
    %589 = vmatprep.subr.mxu0 0.0
    %590 = vmatpush1.xpose.msra.mxu0 0.0
    %591 = vmatprep.subr.mxu0 0.0
    %592 = vmatpush1.xpose.msra.mxu0 0.0
    %593 = vmatprep.subr.mxu0 0.0
    %594 = vmatpush1.xpose.msra.mxu0 0.0
    %595 = vmatprep.subr.mxu0 0.0
    %596 = vmatpush1.xpose.msra.mxu0 0.0
    %597 = vmatprep.subr.mxu0 0.0
    %598 = vmatpush1.xpose.msra.mxu0 0.0
    %599 = vmatprep.subr.mxu0 0.0
    %600 = vmatpush1.xpose.msra.mxu0 0.0
    %601 = vmatprep.subr.mxu0 0.0
    %602 = vmatpush1.xpose.msra.mxu0 0.0
    %603 = vmatprep.subr.mxu0 0.0
    %604 = vmatpush1.xpose.msra.mxu0 0.0
    %605 = vmatprep.subr.mxu0 0.0
    %606 = vmatpush1.xpose.msra.mxu0 0.0
    %607 = vmatprep.subr.mxu0 0.0
    %608 = vmatpush1.xpose.msra.mxu0 0.0
    %609 = vmatprep.subr.mxu0 0.0
    %610 = vmatpush1.xpose.msra.mxu0 0.0
    %611 = vmatprep.subr.mxu0 0.0
    %612 = vmatpush1.xpose.msra.mxu0 0.0
    %613 = vmatprep.subr.mxu0 0.0
    %614 = vmatpush1.xpose.msra.mxu0 0.0
    %615 = vmatprep.subr.mxu0 0.0
    %616 = vmatpush1.xpose.msra.mxu0 0.0
    %v617 = vand.u32 %v82, 4294901760
    %618 = vmatprep.mubr.f32.mxu0 %v617
    %v619 = vand.u32 %v74, 4294901760
    %620 = vmatmul.mubr.f32.gmra.mrb[0].mxu0 %v619
    %v621 = vpop.f32.mrb[0].mxu0
    %v622 = vadd.f32 %v548, %v621
    %v623 = vpop.f32.mrb[0].mxu0
    %624 = vdwg.mxu0
    %v625 = vand.u32 %v127, 4294901760
    %626 = vmatprep.subr.mxu0 %v625
    %v627 = vand.u32 %v125, 4294901760
    %628 = vmatpush1.xpose.msra.mxu0 %v627
    %629 = vmatprep.subr.mxu0 0.0
    %630 = vmatpush1.xpose.msra.mxu0 0.0
    %631 = vmatprep.subr.mxu0 0.0
    %632 = vmatpush1.xpose.msra.mxu0 0.0
    %633 = vmatprep.subr.mxu0 0.0
    %634 = vmatpush1.xpose.msra.mxu0 0.0
    %635 = vmatprep.subr.mxu0 0.0
    %636 = vmatpush1.xpose.msra.mxu0 0.0
    %637 = vmatprep.subr.mxu0 0.0
    %638 = vmatpush1.xpose.msra.mxu0 0.0
    %639 = vmatprep.subr.mxu0 0.0
    %640 = vmatpush1.xpose.msra.mxu0 0.0
    %641 = vmatprep.subr.mxu0 0.0
    %642 = vmatpush1.xpose.msra.mxu0 0.0
    %643 = vmatprep.subr.mxu0 0.0
    %644 = vmatpush1.xpose.msra.mxu0 0.0
    %645 = vmatprep.subr.mxu0 0.0
    %646 = vmatpush1.xpose.msra.mxu0 0.0
    %647 = vmatprep.subr.mxu0 0.0
    %648 = vmatpush1.xpose.msra.mxu0 0.0
    %649 = vmatprep.subr.mxu0 0.0
    %650 = vmatpush1.xpose.msra.mxu0 0.0
    %651 = vmatprep.subr.mxu0 0.0
    %652 = vmatpush1.xpose.msra.mxu0 0.0
    %653 = vmatprep.subr.mxu0 0.0
    %654 = vmatpush1.xpose.msra.mxu0 0.0
    %655 = vmatprep.subr.mxu0 0.0
    %656 = vmatpush1.xpose.msra.mxu0 0.0
    %657 = vmatprep.subr.mxu0 0.0
    %658 = vmatpush1.xpose.msra.mxu0 0.0
    %659 = vmatprep.subr.mxu0 0.0
    %660 = vmatpush1.xpose.msra.mxu0 0.0
    %661 = vmatprep.subr.mxu0 0.0
    %662 = vmatpush1.xpose.msra.mxu0 0.0
    %663 = vmatprep.subr.mxu0 0.0
    %664 = vmatpush1.xpose.msra.mxu0 0.0
    %665 = vmatprep.subr.mxu0 0.0
    %666 = vmatpush1.xpose.msra.mxu0 0.0
    %667 = vmatprep.subr.mxu0 0.0
    %668 = vmatpush1.xpose.msra.mxu0 0.0
    %669 = vmatprep.subr.mxu0 0.0
    %670 = vmatpush1.xpose.msra.mxu0 0.0
    %671 = vmatprep.subr.mxu0 0.0
    %672 = vmatpush1.xpose.msra.mxu0 0.0
    %673 = vmatprep.subr.mxu0 0.0
    %674 = vmatpush1.xpose.msra.mxu0 0.0
    %675 = vmatprep.subr.mxu0 0.0
    %676 = vmatpush1.xpose.msra.mxu0 0.0
    %677 = vmatprep.subr.mxu0 0.0
    %678 = vmatpush1.xpose.msra.mxu0 0.0
    %679 = vmatprep.subr.mxu0 0.0
    %680 = vmatpush1.xpose.msra.mxu0 0.0
    %681 = vmatprep.subr.mxu0 0.0
    %682 = vmatpush1.xpose.msra.mxu0 0.0
    %683 = vmatprep.subr.mxu0 0.0
    %684 = vmatpush1.xpose.msra.mxu0 0.0
    %685 = vmatprep.subr.mxu0 0.0
    %686 = vmatpush1.xpose.msra.mxu0 0.0
    %687 = vmatprep.subr.mxu0 0.0
    %688 = vmatpush1.xpose.msra.mxu0 0.0
    %689 = vmatprep.subr.mxu0 0.0
    %690 = vmatpush1.xpose.msra.mxu0 0.0
    %v691 = vand.u32 %v83, 4294901760
    %v692 = vsub.f32 %v83, %v691
    %v693 = vand.u32 %v692, 4294901760
    %v694 = vsub.f32 %v692, %v693
    %v695 = vand.u32 %v694, 4294901760
    %696 = vmatprep.mubr.f32.mxu0 %v695
    %v697 = vand.u32 %v81, 4294901760
    %v698 = vsub.f32 %v81, %v697
    %v699 = vand.u32 %v698, 4294901760
    %v700 = vsub.f32 %v698, %v699
    %v701 = vand.u32 %v700, 4294901760
    %702 = vmatmul.mubr.f32.gmra.mrb[0].mxu0 %v701
    %v703 = vpop.f32.mrb[0].mxu0
    %v704 = vadd.f32 %v622, %v703
    %v705 = vpop.f32.mrb[0].mxu0
    %706 = vdwg.mxu0
    %v707 = vand.u32 %v127, 4294901760
    %v708 = vsub.f32 %v127, %v707
    %v709 = vand.u32 %v708, 4294901760
    %v710 = vsub.f32 %v708, %v709
    %v711 = vand.u32 %v710, 4294901760
    %712 = vmatprep.subr.mxu0 %v711
    %v713 = vand.u32 %v125, 4294901760
    %v714 = vsub.f32 %v125, %v713
    %v715 = vand.u32 %v714, 4294901760
    %v716 = vsub.f32 %v714, %v715
    %v717 = vand.u32 %v716, 4294901760
    %718 = vmatpush1.xpose.msra.mxu0 %v717
    %719 = vmatprep.subr.mxu0 0.0
    %720 = vmatpush1.xpose.msra.mxu0 0.0
    %721 = vmatprep.subr.mxu0 0.0
    %722 = vmatpush1.xpose.msra.mxu0 0.0
    %723 = vmatprep.subr.mxu0 0.0
    %724 = vmatpush1.xpose.msra.mxu0 0.0
    %725 = vmatprep.subr.mxu0 0.0
    %726 = vmatpush1.xpose.msra.mxu0 0.0
    %727 = vmatprep.subr.mxu0 0.0
    %728 = vmatpush1.xpose.msra.mxu0 0.0
    %729 = vmatprep.subr.mxu0 0.0
    %730 = vmatpush1.xpose.msra.mxu0 0.0
    %731 = vmatprep.subr.mxu0 0.0
    %732 = vmatpush1.xpose.msra.mxu0 0.0
    %733 = vmatprep.subr.mxu0 0.0
    %734 = vmatpush1.xpose.msra.mxu0 0.0
    %735 = vmatprep.subr.mxu0 0.0
    %736 = vmatpush1.xpose.msra.mxu0 0.0
    %737 = vmatprep.subr.mxu0 0.0
    %738 = vmatpush1.xpose.msra.mxu0 0.0
    %739 = vmatprep.subr.mxu0 0.0
    %740 = vmatpush1.xpose.msra.mxu0 0.0
    %741 = vmatprep.subr.mxu0 0.0
    %742 = vmatpush1.xpose.msra.mxu0 0.0
    %743 = vmatprep.subr.mxu0 0.0
    %744 = vmatpush1.xpose.msra.mxu0 0.0
    %745 = vmatprep.subr.mxu0 0.0
    %746 = vmatpush1.xpose.msra.mxu0 0.0
    %747 = vmatprep.subr.mxu0 0.0
    %748 = vmatpush1.xpose.msra.mxu0 0.0
    %749 = vmatprep.subr.mxu0 0.0
    %750 = vmatpush1.xpose.msra.mxu0 0.0
    %751 = vmatprep.subr.mxu0 0.0
    %752 = vmatpush1.xpose.msra.mxu0 0.0
    %753 = vmatprep.subr.mxu0 0.0
    %754 = vmatpush1.xpose.msra.mxu0 0.0
    %755 = vmatprep.subr.mxu0 0.0
    %756 = vmatpush1.xpose.msra.mxu0 0.0
    %757 = vmatprep.subr.mxu0 0.0
    %758 = vmatpush1.xpose.msra.mxu0 0.0
    %759 = vmatprep.subr.mxu0 0.0
    %760 = vmatpush1.xpose.msra.mxu0 0.0
    %761 = vmatprep.subr.mxu0 0.0
    %762 = vmatpush1.xpose.msra.mxu0 0.0
    %763 = vmatprep.subr.mxu0 0.0
    %764 = vmatpush1.xpose.msra.mxu0 0.0
    %765 = vmatprep.subr.mxu0 0.0
    %766 = vmatpush1.xpose.msra.mxu0 0.0
    %767 = vmatprep.subr.mxu0 0.0
    %768 = vmatpush1.xpose.msra.mxu0 0.0
    %769 = vmatprep.subr.mxu0 0.0
    %770 = vmatpush1.xpose.msra.mxu0 0.0
    %771 = vmatprep.subr.mxu0 0.0
    %772 = vmatpush1.xpose.msra.mxu0 0.0
    %773 = vmatprep.subr.mxu0 0.0
    %774 = vmatpush1.xpose.msra.mxu0 0.0
    %775 = vmatprep.subr.mxu0 0.0
    %776 = vmatpush1.xpose.msra.mxu0 0.0
    %777 = vmatprep.subr.mxu0 0.0
    %778 = vmatpush1.xpose.msra.mxu0 0.0
    %779 = vmatprep.subr.mxu0 0.0
    %780 = vmatpush1.xpose.msra.mxu0 0.0
    %v781 = vand.u32 %v83, 4294901760
    %782 = vmatprep.mubr.f32.mxu0 %v781
    %v783 = vand.u32 %v81, 4294901760
    %784 = vmatmul.mubr.f32.gmra.mrb[0].mxu0 %v783
    %v785 = vpop.f32.mrb[0].mxu0
    %v786 = vadd.f32 %v704, %v785
    %v787 = vpop.f32.mrb[0].mxu0
    %788 = vdwg.mxu0
    %v789 = vand.u32 %v127, 4294901760
    %v790 = vsub.f32 %v127, %v789
    %791 = vmatprep.subr.mxu0 %v790
    %v792 = vand.u32 %v125, 4294901760
    %v793 = vsub.f32 %v125, %v792
    %794 = vmatpush1.xpose.msra.mxu0 %v793
    %795 = vmatprep.subr.mxu0 0.0
    %796 = vmatpush1.xpose.msra.mxu0 0.0
    %797 = vmatprep.subr.mxu0 0.0
    %798 = vmatpush1.xpose.msra.mxu0 0.0
    %799 = vmatprep.subr.mxu0 0.0
    %800 = vmatpush1.xpose.msra.mxu0 0.0
    %801 = vmatprep.subr.mxu0 0.0
    %802 = vmatpush1.xpose.msra.mxu0 0.0
    %803 = vmatprep.subr.mxu0 0.0
    %804 = vmatpush1.xpose.msra.mxu0 0.0
    %805 = vmatprep.subr.mxu0 0.0
    %806 = vmatpush1.xpose.msra.mxu0 0.0
    %807 = vmatprep.subr.mxu0 0.0
    %808 = vmatpush1.xpose.msra.mxu0 0.0
    %809 = vmatprep.subr.mxu0 0.0
    %810 = vmatpush1.xpose.msra.mxu0 0.0
    %811 = vmatprep.subr.mxu0 0.0
    %812 = vmatpush1.xpose.msra.mxu0 0.0
    %813 = vmatprep.subr.mxu0 0.0
    %814 = vmatpush1.xpose.msra.mxu0 0.0
    %815 = vmatprep.subr.mxu0 0.0
    %816 = vmatpush1.xpose.msra.mxu0 0.0
    %817 = vmatprep.subr.mxu0 0.0
    %818 = vmatpush1.xpose.msra.mxu0 0.0
    %819 = vmatprep.subr.mxu0 0.0
    %820 = vmatpush1.xpose.msra.mxu0 0.0
    %821 = vmatprep.subr.mxu0 0.0
    %822 = vmatpush1.xpose.msra.mxu0 0.0
    %823 = vmatprep.subr.mxu0 0.0
    %824 = vmatpush1.xpose.msra.mxu0 0.0
    %825 = vmatprep.subr.mxu0 0.0
    %826 = vmatpush1.xpose.msra.mxu0 0.0
    %827 = vmatprep.subr.mxu0 0.0
    %828 = vmatpush1.xpose.msra.mxu0 0.0
    %829 = vmatprep.subr.mxu0 0.0
    %830 = vmatpush1.xpose.msra.mxu0 0.0
    %831 = vmatprep.subr.mxu0 0.0
    %832 = vmatpush1.xpose.msra.mxu0 0.0
    %833 = vmatprep.subr.mxu0 0.0
    %834 = vmatpush1.xpose.msra.mxu0 0.0
    %835 = vmatprep.subr.mxu0 0.0
    %836 = vmatpush1.xpose.msra.mxu0 0.0
    %837 = vmatprep.subr.mxu0 0.0
    %838 = vmatpush1.xpose.msra.mxu0 0.0
    %839 = vmatprep.subr.mxu0 0.0
    %840 = vmatpush1.xpose.msra.mxu0 0.0
    %841 = vmatprep.subr.mxu0 0.0
    %842 = vmatpush1.xpose.msra.mxu0 0.0
    %843 = vmatprep.subr.mxu0 0.0
    %844 = vmatpush1.xpose.msra.mxu0 0.0
    %845 = vmatprep.subr.mxu0 0.0
    %846 = vmatpush1.xpose.msra.mxu0 0.0
    %847 = vmatprep.subr.mxu0 0.0
    %848 = vmatpush1.xpose.msra.mxu0 0.0
    %849 = vmatprep.subr.mxu0 0.0
    %850 = vmatpush1.xpose.msra.mxu0 0.0
    %851 = vmatprep.subr.mxu0 0.0
    %852 = vmatpush1.xpose.msra.mxu0 0.0
    %853 = vmatprep.subr.mxu0 0.0
    %854 = vmatpush1.xpose.msra.mxu0 0.0
    %855 = vmatprep.subr.mxu0 0.0
    %856 = vmatpush1.xpose.msra.mxu0 0.0
    %v857 = vand.u32 %v83, 4294901760
    %v858 = vsub.f32 %v83, %v857
    %859 = vmatprep.mubr.f32.mxu0 %v858
    %v860 = vand.u32 %v81, 4294901760
    %v861 = vsub.f32 %v81, %v860
    %862 = vmatmul.mubr.f32.gmra.mrb[0].mxu0 %v861
    %v863 = vpop.f32.mrb[0].mxu0
    %v864 = vadd.f32 %v786, %v863
    %v865 = vpop.f32.mrb[0].mxu0
    %866 = vdwg.mxu0
    %v867 = vand.u32 %v127, 4294901760
    %868 = vmatprep.subr.mxu0 %v867
    %v869 = vand.u32 %v125, 4294901760
    %870 = vmatpush1.xpose.msra.mxu0 %v869
    %871 = vmatprep.subr.mxu0 0.0
    %872 = vmatpush1.xpose.msra.mxu0 0.0
    %873 = vmatprep.subr.mxu0 0.0
    %874 = vmatpush1.xpose.msra.mxu0 0.0
    %875 = vmatprep.subr.mxu0 0.0
    %876 = vmatpush1.xpose.msra.mxu0 0.0
    %877 = vmatprep.subr.mxu0 0.0
    %878 = vmatpush1.xpose.msra.mxu0 0.0
    %879 = vmatprep.subr.mxu0 0.0
    %880 = vmatpush1.xpose.msra.mxu0 0.0
    %881 = vmatprep.subr.mxu0 0.0
    %882 = vmatpush1.xpose.msra.mxu0 0.0
    %883 = vmatprep.subr.mxu0 0.0
    %884 = vmatpush1.xpose.msra.mxu0 0.0
    %885 = vmatprep.subr.mxu0 0.0
    %886 = vmatpush1.xpose.msra.mxu0 0.0
    %887 = vmatprep.subr.mxu0 0.0
    %888 = vmatpush1.xpose.msra.mxu0 0.0
    %889 = vmatprep.subr.mxu0 0.0
    %890 = vmatpush1.xpose.msra.mxu0 0.0
    %891 = vmatprep.subr.mxu0 0.0
    %892 = vmatpush1.xpose.msra.mxu0 0.0
    %893 = vmatprep.subr.mxu0 0.0
    %894 = vmatpush1.xpose.msra.mxu0 0.0
    %895 = vmatprep.subr.mxu0 0.0
    %896 = vmatpush1.xpose.msra.mxu0 0.0
    %897 = vmatprep.subr.mxu0 0.0
    %898 = vmatpush1.xpose.msra.mxu0 0.0
    %899 = vmatprep.subr.mxu0 0.0
    %900 = vmatpush1.xpose.msra.mxu0 0.0
    %901 = vmatprep.subr.mxu0 0.0
    %902 = vmatpush1.xpose.msra.mxu0 0.0
    %903 = vmatprep.subr.mxu0 0.0
    %904 = vmatpush1.xpose.msra.mxu0 0.0
    %905 = vmatprep.subr.mxu0 0.0
    %906 = vmatpush1.xpose.msra.mxu0 0.0
    %907 = vmatprep.subr.mxu0 0.0
    %908 = vmatpush1.xpose.msra.mxu0 0.0
    %909 = vmatprep.subr.mxu0 0.0
    %910 = vmatpush1.xpose.msra.mxu0 0.0
    %911 = vmatprep.subr.mxu0 0.0
    %912 = vmatpush1.xpose.msra.mxu0 0.0
    %913 = vmatprep.subr.mxu0 0.0
    %914 = vmatpush1.xpose.msra.mxu0 0.0
    %915 = vmatprep.subr.mxu0 0.0
    %916 = vmatpush1.xpose.msra.mxu0 0.0
    %917 = vmatprep.subr.mxu0 0.0
    %918 = vmatpush1.xpose.msra.mxu0 0.0
    %919 = vmatprep.subr.mxu0 0.0
    %920 = vmatpush1.xpose.msra.mxu0 0.0
    %921 = vmatprep.subr.mxu0 0.0
    %922 = vmatpush1.xpose.msra.mxu0 0.0
    %923 = vmatprep.subr.mxu0 0.0
    %924 = vmatpush1.xpose.msra.mxu0 0.0
    %925 = vmatprep.subr.mxu0 0.0
    %926 = vmatpush1.xpose.msra.mxu0 0.0
    %927 = vmatprep.subr.mxu0 0.0
    %928 = vmatpush1.xpose.msra.mxu0 0.0
    %929 = vmatprep.subr.mxu0 0.0
    %930 = vmatpush1.xpose.msra.mxu0 0.0
    %931 = vmatprep.subr.mxu0 0.0
    %932 = vmatpush1.xpose.msra.mxu0 0.0
    %v933 = vand.u32 %v83, 4294901760
    %v934 = vsub.f32 %v83, %v933
    %v935 = vand.u32 %v934, 4294901760
    %936 = vmatprep.mubr.f32.mxu0 %v935
    %v937 = vand.u32 %v81, 4294901760
    %v938 = vsub.f32 %v81, %v937
    %v939 = vand.u32 %v938, 4294901760
    %940 = vmatmul.mubr.f32.gmra.mrb[0].mxu0 %v939
    %v941 = vpop.f32.mrb[0].mxu0
    %v942 = vadd.f32 %v864, %v941
    %v943 = vpop.f32.mrb[0].mxu0
    %944 = vdwg.mxu0
    %v945 = vand.u32 %v127, 4294901760
    %v946 = vsub.f32 %v127, %v945
    %v947 = vand.u32 %v946, 4294901760
    %948 = vmatprep.subr.mxu0 %v947
    %v949 = vand.u32 %v125, 4294901760
    %v950 = vsub.f32 %v125, %v949
    %v951 = vand.u32 %v950, 4294901760
    %952 = vmatpush1.xpose.msra.mxu0 %v951
    %953 = vmatprep.subr.mxu0 0.0
    %954 = vmatpush1.xpose.msra.mxu0 0.0
    %955 = vmatprep.subr.mxu0 0.0
    %956 = vmatpush1.xpose.msra.mxu0 0.0
    %957 = vmatprep.subr.mxu0 0.0
    %958 = vmatpush1.xpose.msra.mxu0 0.0
    %959 = vmatprep.subr.mxu0 0.0
    %960 = vmatpush1.xpose.msra.mxu0 0.0
    %961 = vmatprep.subr.mxu0 0.0
    %962 = vmatpush1.xpose.msra.mxu0 0.0
    %963 = vmatprep.subr.mxu0 0.0
    %964 = vmatpush1.xpose.msra.mxu0 0.0
    %965 = vmatprep.subr.mxu0 0.0
    %966 = vmatpush1.xpose.msra.mxu0 0.0
    %967 = vmatprep.subr.mxu0 0.0
    %968 = vmatpush1.xpose.msra.mxu0 0.0
    %969 = vmatprep.subr.mxu0 0.0
    %970 = vmatpush1.xpose.msra.mxu0 0.0
    %971 = vmatprep.subr.mxu0 0.0
    %972 = vmatpush1.xpose.msra.mxu0 0.0
    %973 = vmatprep.subr.mxu0 0.0
    %974 = vmatpush1.xpose.msra.mxu0 0.0
    %975 = vmatprep.subr.mxu0 0.0
    %976 = vmatpush1.xpose.msra.mxu0 0.0
    %977 = vmatprep.subr.mxu0 0.0
    %978 = vmatpush1.xpose.msra.mxu0 0.0
    %979 = vmatprep.subr.mxu0 0.0
    %980 = vmatpush1.xpose.msra.mxu0 0.0
    %981 = vmatprep.subr.mxu0 0.0
    %982 = vmatpush1.xpose.msra.mxu0 0.0
    %983 = vmatprep.subr.mxu0 0.0
    %984 = vmatpush1.xpose.msra.mxu0 0.0
    %985 = vmatprep.subr.mxu0 0.0
    %986 = vmatpush1.xpose.msra.mxu0 0.0
    %987 = vmatprep.subr.mxu0 0.0
    %988 = vmatpush1.xpose.msra.mxu0 0.0
    %989 = vmatprep.subr.mxu0 0.0
    %990 = vmatpush1.xpose.msra.mxu0 0.0
    %991 = vmatprep.subr.mxu0 0.0
    %992 = vmatpush1.xpose.msra.mxu0 0.0
    %993 = vmatprep.subr.mxu0 0.0
    %994 = vmatpush1.xpose.msra.mxu0 0.0
    %995 = vmatprep.subr.mxu0 0.0
    %996 = vmatpush1.xpose.msra.mxu0 0.0
    %997 = vmatprep.subr.mxu0 0.0
    %998 = vmatpush1.xpose.msra.mxu0 0.0
    %999 = vmatprep.subr.mxu0 0.0
    %1000 = vmatpush1.xpose.msra.mxu0 0.0
    %1001 = vmatprep.subr.mxu0 0.0
    %1002 = vmatpush1.xpose.msra.mxu0 0.0
    %1003 = vmatprep.subr.mxu0 0.0
    %1004 = vmatpush1.xpose.msra.mxu0 0.0
    %1005 = vmatprep.subr.mxu0 0.0
    %1006 = vmatpush1.xpose.msra.mxu0 0.0
    %1007 = vmatprep.subr.mxu0 0.0
    %1008 = vmatpush1.xpose.msra.mxu0 0.0
    %1009 = vmatprep.subr.mxu0 0.0
    %1010 = vmatpush1.xpose.msra.mxu0 0.0
    %1011 = vmatprep.subr.mxu0 0.0
    %1012 = vmatpush1.xpose.msra.mxu0 0.0
    %1013 = vmatprep.subr.mxu0 0.0
    %1014 = vmatpush1.xpose.msra.mxu0 0.0
    %v1015 = vand.u32 %v83, 4294901760
    %1016 = vmatprep.mubr.f32.mxu0 %v1015
    %v1017 = vand.u32 %v81, 4294901760
    %1018 = vmatmul.mubr.f32.gmra.mrb[0].mxu0 %v1017
    %v1019 = vpop.f32.mrb[0].mxu0
    %v1020 = vadd.f32 %v942, %v1019
    %v1021 = vpop.f32.mrb[0].mxu0
    %1022 = vdwg.mxu0
    %v1023 = vand.u32 %v127, 4294901760
    %1024 = vmatprep.subr.mxu0 %v1023
    %v1025 = vand.u32 %v125, 4294901760
    %1026 = vmatpush1.xpose.msra.mxu0 %v1025
    %1027 = vmatprep.subr.mxu0 0.0
    %1028 = vmatpush1.xpose.msra.mxu0 0.0
    %1029 = vmatprep.subr.mxu0 0.0
    %1030 = vmatpush1.xpose.msra.mxu0 0.0
    %1031 = vmatprep.subr.mxu0 0.0
    %1032 = vmatpush1.xpose.msra.mxu0 0.0
    %1033 = vmatprep.subr.mxu0 0.0
    %1034 = vmatpush1.xpose.msra.mxu0 0.0
    %1035 = vmatprep.subr.mxu0 0.0
    %1036 = vmatpush1.xpose.msra.mxu0 0.0
    %1037 = vmatprep.subr.mxu0 0.0
    %1038 = vmatpush1.xpose.msra.mxu0 0.0
    %1039 = vmatprep.subr.mxu0 0.0
    %1040 = vmatpush1.xpose.msra.mxu0 0.0
    %1041 = vmatprep.subr.mxu0 0.0
    %1042 = vmatpush1.xpose.msra.mxu0 0.0
    %1043 = vmatprep.subr.mxu0 0.0
    %1044 = vmatpush1.xpose.msra.mxu0 0.0
    %1045 = vmatprep.subr.mxu0 0.0
    %1046 = vmatpush1.xpose.msra.mxu0 0.0
    %1047 = vmatprep.subr.mxu0 0.0
    %1048 = vmatpush1.xpose.msra.mxu0 0.0
    %1049 = vmatprep.subr.mxu0 0.0
    %1050 = vmatpush1.xpose.msra.mxu0 0.0
    %1051 = vmatprep.subr.mxu0 0.0
    %1052 = vmatpush1.xpose.msra.mxu0 0.0
    %1053 = vmatprep.subr.mxu0 0.0
    %1054 = vmatpush1.xpose.msra.mxu0 0.0
    %1055 = vmatprep.subr.mxu0 0.0
    %1056 = vmatpush1.xpose.msra.mxu0 0.0
    %1057 = vmatprep.subr.mxu0 0.0
    %1058 = vmatpush1.xpose.msra.mxu0 0.0
    %1059 = vmatprep.subr.mxu0 0.0
    %1060 = vmatpush1.xpose.msra.mxu0 0.0
    %1061 = vmatprep.subr.mxu0 0.0
    %1062 = vmatpush1.xpose.msra.mxu0 0.0
    %1063 = vmatprep.subr.mxu0 0.0
    %1064 = vmatpush1.xpose.msra.mxu0 0.0
    %1065 = vmatprep.subr.mxu0 0.0
    %1066 = vmatpush1.xpose.msra.mxu0 0.0
    %1067 = vmatprep.subr.mxu0 0.0
    %1068 = vmatpush1.xpose.msra.mxu0 0.0
    %1069 = vmatprep.subr.mxu0 0.0
    %1070 = vmatpush1.xpose.msra.mxu0 0.0
    %1071 = vmatprep.subr.mxu0 0.0
    %1072 = vmatpush1.xpose.msra.mxu0 0.0
    %1073 = vmatprep.subr.mxu0 0.0
    %1074 = vmatpush1.xpose.msra.mxu0 0.0
    %1075 = vmatprep.subr.mxu0 0.0
    %1076 = vmatpush1.xpose.msra.mxu0 0.0
    %1077 = vmatprep.subr.mxu0 0.0
    %1078 = vmatpush1.xpose.msra.mxu0 0.0
    %1079 = vmatprep.subr.mxu0 0.0
    %1080 = vmatpush1.xpose.msra.mxu0 0.0
    %1081 = vmatprep.subr.mxu0 0.0
    %1082 = vmatpush1.xpose.msra.mxu0 0.0
    %1083 = vmatprep.subr.mxu0 0.0
    %1084 = vmatpush1.xpose.msra.mxu0 0.0
    %1085 = vmatprep.subr.mxu0 0.0
    %1086 = vmatpush1.xpose.msra.mxu0 0.0
    %1087 = vmatprep.subr.mxu0 0.0
    %1088 = vmatpush1.xpose.msra.mxu0 0.0
    %v1089 = vand.u32 %v83, 4294901760
    %1090 = vmatprep.mubr.f32.mxu0 %v1089
    %v1091 = vand.u32 %v81, 4294901760
    %1092 = vmatmul.mubr.f32.gmra.mrb[0].mxu0 %v1091
    %v1093 = vpop.f32.mrb[0].mxu0
    %v1094 = vadd.f32 %v1020, %v1093
    %v1095 = vpop.f32.mrb[0].mxu0
    %1096 = vdwg.mxu0
    %v1097 = vand.u32 %v143, 4294901760
    %1098 = vmatprep.subr.mxu0 %v1097
    %v1099 = vand.u32 %v135, 4294901760
    %1100 = vmatpush1.xpose.msra.mxu0 %v1099
    %1101 = vmatprep.subr.mxu0 0.0
    %1102 = vmatpush1.xpose.msra.mxu0 0.0
    %1103 = vmatprep.subr.mxu0 0.0
    %1104 = vmatpush1.xpose.msra.mxu0 0.0
    %1105 = vmatprep.subr.mxu0 0.0
    %1106 = vmatpush1.xpose.msra.mxu0 0.0
    %1107 = vmatprep.subr.mxu0 0.0
    %1108 = vmatpush1.xpose.msra.mxu0 0.0
    %1109 = vmatprep.subr.mxu0 0.0
    %1110 = vmatpush1.xpose.msra.mxu0 0.0
    %1111 = vmatprep.subr.mxu0 0.0
    %1112 = vmatpush1.xpose.msra.mxu0 0.0
    %1113 = vmatprep.subr.mxu0 0.0
    %1114 = vmatpush1.xpose.msra.mxu0 0.0
    %1115 = vmatprep.subr.mxu0 0.0
    %1116 = vmatpush1.xpose.msra.mxu0 0.0
    %1117 = vmatprep.subr.mxu0 0.0
    %1118 = vmatpush1.xpose.msra.mxu0 0.0
    %1119 = vmatprep.subr.mxu0 0.0
    %1120 = vmatpush1.xpose.msra.mxu0 0.0
    %1121 = vmatprep.subr.mxu0 0.0
    %1122 = vmatpush1.xpose.msra.mxu0 0.0
    %1123 = vmatprep.subr.mxu0 0.0
    %1124 = vmatpush1.xpose.msra.mxu0 0.0
    %1125 = vmatprep.subr.mxu0 0.0
    %1126 = vmatpush1.xpose.msra.mxu0 0.0
    %1127 = vmatprep.subr.mxu0 0.0
    %1128 = vmatpush1.xpose.msra.mxu0 0.0
    %1129 = vmatprep.subr.mxu0 0.0
    %1130 = vmatpush1.xpose.msra.mxu0 0.0
    %1131 = vmatprep.subr.mxu0 0.0
    %1132 = vmatpush1.xpose.msra.mxu0 0.0
    %1133 = vmatprep.subr.mxu0 0.0
    %1134 = vmatpush1.xpose.msra.mxu0 0.0
    %1135 = vmatprep.subr.mxu0 0.0
    %1136 = vmatpush1.xpose.msra.mxu0 0.0
    %1137 = vmatprep.subr.mxu0 0.0
    %1138 = vmatpush1.xpose.msra.mxu0 0.0
    %1139 = vmatprep.subr.mxu0 0.0
    %1140 = vmatpush1.xpose.msra.mxu0 0.0
    %1141 = vmatprep.subr.mxu0 0.0
    %1142 = vmatpush1.xpose.msra.mxu0 0.0
    %1143 = vmatprep.subr.mxu0 0.0
    %1144 = vmatpush1.xpose.msra.mxu0 0.0
    %1145 = vmatprep.subr.mxu0 0.0
    %1146 = vmatpush1.xpose.msra.mxu0 0.0
    %1147 = vmatprep.subr.mxu0 0.0
    %1148 = vmatpush1.xpose.msra.mxu0 0.0
    %1149 = vmatprep.subr.mxu0 0.0
    %1150 = vmatpush1.xpose.msra.mxu0 0.0
    %1151 = vmatprep.subr.mxu0 0.0
    %1152 = vmatpush1.xpose.msra.mxu0 0.0
    %1153 = vmatprep.subr.mxu0 0.0
    %1154 = vmatpush1.xpose.msra.mxu0 0.0
    %1155 = vmatprep.subr.mxu0 0.0
    %1156 = vmatpush1.xpose.msra.mxu0 0.0
    %1157 = vmatprep.subr.mxu0 0.0
    %1158 = vmatpush1.xpose.msra.mxu0 0.0
    %1159 = vmatprep.subr.mxu0 0.0
    %1160 = vmatpush1.xpose.msra.mxu0 0.0
    %1161 = vmatprep.subr.mxu0 0.0
    %1162 = vmatpush1.xpose.msra.mxu0 0.0
    %v1163 = vand.u32 %v99, 4294901760
    %v1164 = vsub.f32 %v99, %v1163
    %v1165 = vand.u32 %v1164, 4294901760
    %v1166 = vsub.f32 %v1164, %v1165
    %v1167 = vand.u32 %v1166, 4294901760
    %1168 = vmatprep.mubr.f32.mxu0 %v1167
    %v1169 = vand.u32 %v91, 4294901760
    %v1170 = vsub.f32 %v91, %v1169
    %v1171 = vand.u32 %v1170, 4294901760
    %v1172 = vsub.f32 %v1170, %v1171
    %v1173 = vand.u32 %v1172, 4294901760
    %1174 = vmatmul.mubr.f32.gmra.mrb[0].mxu0 %v1173
    %v1175 = vpop.f32.mrb[0].mxu0
    %v1176 = vadd.f32 %v1094, %v1175
    %v1177 = vpop.f32.mrb[0].mxu0
    %1178 = vdwg.mxu0
    %v1179 = vand.u32 %v143, 4294901760
    %v1180 = vsub.f32 %v143, %v1179
    %v1181 = vand.u32 %v1180, 4294901760
    %v1182 = vsub.f32 %v1180, %v1181
    %v1183 = vand.u32 %v1182, 4294901760
    %1184 = vmatprep.subr.mxu0 %v1183
    %v1185 = vand.u32 %v135, 4294901760
    %v1186 = vsub.f32 %v135, %v1185
    %v1187 = vand.u32 %v1186, 4294901760
    %v1188 = vsub.f32 %v1186, %v1187
    %v1189 = vand.u32 %v1188, 4294901760
    %1190 = vmatpush1.xpose.msra.mxu0 %v1189
    %1191 = vmatprep.subr.mxu0 0.0
    %1192 = vmatpush1.xpose.msra.mxu0 0.0
    %1193 = vmatprep.subr.mxu0 0.0
    %1194 = vmatpush1.xpose.msra.mxu0 0.0
    %1195 = vmatprep.subr.mxu0 0.0
    %1196 = vmatpush1.xpose.msra.mxu0 0.0
    %1197 = vmatprep.subr.mxu0 0.0
    %1198 = vmatpush1.xpose.msra.mxu0 0.0
    %1199 = vmatprep.subr.mxu0 0.0
    %1200 = vmatpush1.xpose.msra.mxu0 0.0
    %1201 = vmatprep.subr.mxu0 0.0
    %1202 = vmatpush1.xpose.msra.mxu0 0.0
    %1203 = vmatprep.subr.mxu0 0.0
    %1204 = vmatpush1.xpose.msra.mxu0 0.0
    %1205 = vmatprep.subr.mxu0 0.0
    %1206 = vmatpush1.xpose.msra.mxu0 0.0
    %1207 = vmatprep.subr.mxu0 0.0
    %1208 = vmatpush1.xpose.msra.mxu0 0.0
    %1209 = vmatprep.subr.mxu0 0.0
    %1210 = vmatpush1.xpose.msra.mxu0 0.0
    %1211 = vmatprep.subr.mxu0 0.0
    %1212 = vmatpush1.xpose.msra.mxu0 0.0
    %1213 = vmatprep.subr.mxu0 0.0
    %1214 = vmatpush1.xpose.msra.mxu0 0.0
    %1215 = vmatprep.subr.mxu0 0.0
    %1216 = vmatpush1.xpose.msra.mxu0 0.0
    %1217 = vmatprep.subr.mxu0 0.0
    %1218 = vmatpush1.xpose.msra.mxu0 0.0
    %1219 = vmatprep.subr.mxu0 0.0
    %1220 = vmatpush1.xpose.msra.mxu0 0.0
    %1221 = vmatprep.subr.mxu0 0.0
    %1222 = vmatpush1.xpose.msra.mxu0 0.0
    %1223 = vmatprep.subr.mxu0 0.0
    %1224 = vmatpush1.xpose.msra.mxu0 0.0
    %1225 = vmatprep.subr.mxu0 0.0
    %1226 = vmatpush1.xpose.msra.mxu0 0.0
    %1227 = vmatprep.subr.mxu0 0.0
    %1228 = vmatpush1.xpose.msra.mxu0 0.0
    %1229 = vmatprep.subr.mxu0 0.0
    %1230 = vmatpush1.xpose.msra.mxu0 0.0
    %1231 = vmatprep.subr.mxu0 0.0
    %1232 = vmatpush1.xpose.msra.mxu0 0.0
    %1233 = vmatprep.subr.mxu0 0.0
    %1234 = vmatpush1.xpose.msra.mxu0 0.0
    %1235 = vmatprep.subr.mxu0 0.0
    %1236 = vmatpush1.xpose.msra.mxu0 0.0
    %1237 = vmatprep.subr.mxu0 0.0
    %1238 = vmatpush1.xpose.msra.mxu0 0.0
    %1239 = vmatprep.subr.mxu0 0.0
    %1240 = vmatpush1.xpose.msra.mxu0 0.0
    %1241 = vmatprep.subr.mxu0 0.0
    %1242 = vmatpush1.xpose.msra.mxu0 0.0
    %1243 = vmatprep.subr.mxu0 0.0
    %1244 = vmatpush1.xpose.msra.mxu0 0.0
    %1245 = vmatprep.subr.mxu0 0.0
    %1246 = vmatpush1.xpose.msra.mxu0 0.0
    %1247 = vmatprep.subr.mxu0 0.0
    %1248 = vmatpush1.xpose.msra.mxu0 0.0
    %1249 = vmatprep.subr.mxu0 0.0
    %1250 = vmatpush1.xpose.msra.mxu0 0.0
    %1251 = vmatprep.subr.mxu0 0.0
    %1252 = vmatpush1.xpose.msra.mxu0 0.0
    %v1253 = vand.u32 %v99, 4294901760
    %1254 = vmatprep.mubr.f32.mxu0 %v1253
    %v1255 = vand.u32 %v91, 4294901760
    %1256 = vmatmul.mubr.f32.gmra.mrb[0].mxu0 %v1255
    %v1257 = vpop.f32.mrb[0].mxu0
    %v1258 = vadd.f32 %v1176, %v1257
    %v1259 = vpop.f32.mrb[0].mxu0
    %1260 = vdwg.mxu0
    %v1261 = vand.u32 %v143, 4294901760
    %v1262 = vsub.f32 %v143, %v1261
    %1263 = vmatprep.subr.mxu0 %v1262
    %v1264 = vand.u32 %v135, 4294901760
    %v1265 = vsub.f32 %v135, %v1264
    %1266 = vmatpush1.xpose.msra.mxu0 %v1265
    %1267 = vmatprep.subr.mxu0 0.0
    %1268 = vmatpush1.xpose.msra.mxu0 0.0
    %1269 = vmatprep.subr.mxu0 0.0
    %1270 = vmatpush1.xpose.msra.mxu0 0.0
    %1271 = vmatprep.subr.mxu0 0.0
    %1272 = vmatpush1.xpose.msra.mxu0 0.0
    %1273 = vmatprep.subr.mxu0 0.0
    %1274 = vmatpush1.xpose.msra.mxu0 0.0
    %1275 = vmatprep.subr.mxu0 0.0
    %1276 = vmatpush1.xpose.msra.mxu0 0.0
    %1277 = vmatprep.subr.mxu0 0.0
    %1278 = vmatpush1.xpose.msra.mxu0 0.0
    %1279 = vmatprep.subr.mxu0 0.0
    %1280 = vmatpush1.xpose.msra.mxu0 0.0
    %1281 = vmatprep.subr.mxu0 0.0
    %1282 = vmatpush1.xpose.msra.mxu0 0.0
    %1283 = vmatprep.subr.mxu0 0.0
    %1284 = vmatpush1.xpose.msra.mxu0 0.0
    %1285 = vmatprep.subr.mxu0 0.0
    %1286 = vmatpush1.xpose.msra.mxu0 0.0
    %1287 = vmatprep.subr.mxu0 0.0
    %1288 = vmatpush1.xpose.msra.mxu0 0.0
    %1289 = vmatprep.subr.mxu0 0.0
    %1290 = vmatpush1.xpose.msra.mxu0 0.0
    %1291 = vmatprep.subr.mxu0 0.0
    %1292 = vmatpush1.xpose.msra.mxu0 0.0
    %1293 = vmatprep.subr.mxu0 0.0
    %1294 = vmatpush1.xpose.msra.mxu0 0.0
    %1295 = vmatprep.subr.mxu0 0.0
    %1296 = vmatpush1.xpose.msra.mxu0 0.0
    %1297 = vmatprep.subr.mxu0 0.0
    %1298 = vmatpush1.xpose.msra.mxu0 0.0
    %1299 = vmatprep.subr.mxu0 0.0
    %1300 = vmatpush1.xpose.msra.mxu0 0.0
    %1301 = vmatprep.subr.mxu0 0.0
    %1302 = vmatpush1.xpose.msra.mxu0 0.0
    %1303 = vmatprep.subr.mxu0 0.0
    %1304 = vmatpush1.xpose.msra.mxu0 0.0
    %1305 = vmatprep.subr.mxu0 0.0
    %1306 = vmatpush1.xpose.msra.mxu0 0.0
    %1307 = vmatprep.subr.mxu0 0.0
    %1308 = vmatpush1.xpose.msra.mxu0 0.0
    %1309 = vmatprep.subr.mxu0 0.0
    %1310 = vmatpush1.xpose.msra.mxu0 0.0
    %1311 = vmatprep.subr.mxu0 0.0
    %1312 = vmatpush1.xpose.msra.mxu0 0.0
    %1313 = vmatprep.subr.mxu0 0.0
    %1314 = vmatpush1.xpose.msra.mxu0 0.0
    %1315 = vmatprep.subr.mxu0 0.0
    %1316 = vmatpush1.xpose.msra.mxu0 0.0
    %1317 = vmatprep.subr.mxu0 0.0
    %1318 = vmatpush1.xpose.msra.mxu0 0.0
    %1319 = vmatprep.subr.mxu0 0.0
    %1320 = vmatpush1.xpose.msra.mxu0 0.0
    %1321 = vmatprep.subr.mxu0 0.0
    %1322 = vmatpush1.xpose.msra.mxu0 0.0
    %1323 = vmatprep.subr.mxu0 0.0
    %1324 = vmatpush1.xpose.msra.mxu0 0.0
    %1325 = vmatprep.subr.mxu0 0.0
    %1326 = vmatpush1.xpose.msra.mxu0 0.0
    %1327 = vmatprep.subr.mxu0 0.0
    %1328 = vmatpush1.xpose.msra.mxu0 0.0
    %v1329 = vand.u32 %v99, 4294901760
    %v1330 = vsub.f32 %v99, %v1329
    %1331 = vmatprep.mubr.f32.mxu0 %v1330
    %v1332 = vand.u32 %v91, 4294901760
    %v1333 = vsub.f32 %v91, %v1332
    %1334 = vmatmul.mubr.f32.gmra.mrb[0].mxu0 %v1333
    %v1335 = vpop.f32.mrb[0].mxu0
    %v1336 = vadd.f32 %v1258, %v1335
    %v1337 = vpop.f32.mrb[0].mxu0
    %1338 = vdwg.mxu0
    %v1339 = vand.u32 %v143, 4294901760
    %1340 = vmatprep.subr.mxu0 %v1339
    %v1341 = vand.u32 %v135, 4294901760
    %1342 = vmatpush1.xpose.msra.mxu0 %v1341
    %1343 = vmatprep.subr.mxu0 0.0
    %1344 = vmatpush1.xpose.msra.mxu0 0.0
    %1345 = vmatprep.subr.mxu0 0.0
    %1346 = vmatpush1.xpose.msra.mxu0 0.0
    %1347 = vmatprep.subr.mxu0 0.0
    %1348 = vmatpush1.xpose.msra.mxu0 0.0
    %1349 = vmatprep.subr.mxu0 0.0
    %1350 = vmatpush1.xpose.msra.mxu0 0.0
    %1351 = vmatprep.subr.mxu0 0.0
    %1352 = vmatpush1.xpose.msra.mxu0 0.0
    %1353 = vmatprep.subr.mxu0 0.0
    %1354 = vmatpush1.xpose.msra.mxu0 0.0
    %1355 = vmatprep.subr.mxu0 0.0
    %1356 = vmatpush1.xpose.msra.mxu0 0.0
    %1357 = vmatprep.subr.mxu0 0.0
    %1358 = vmatpush1.xpose.msra.mxu0 0.0
    %1359 = vmatprep.subr.mxu0 0.0
    %1360 = vmatpush1.xpose.msra.mxu0 0.0
    %1361 = vmatprep.subr.mxu0 0.0
    %1362 = vmatpush1.xpose.msra.mxu0 0.0
    %1363 = vmatprep.subr.mxu0 0.0
    %1364 = vmatpush1.xpose.msra.mxu0 0.0
    %1365 = vmatprep.subr.mxu0 0.0
    %1366 = vmatpush1.xpose.msra.mxu0 0.0
    %1367 = vmatprep.subr.mxu0 0.0
    %1368 = vmatpush1.xpose.msra.mxu0 0.0
    %1369 = vmatprep.subr.mxu0 0.0
    %1370 = vmatpush1.xpose.msra.mxu0 0.0
    %1371 = vmatprep.subr.mxu0 0.0
    %1372 = vmatpush1.xpose.msra.mxu0 0.0
    %1373 = vmatprep.subr.mxu0 0.0
    %1374 = vmatpush1.xpose.msra.mxu0 0.0
    %1375 = vmatprep.subr.mxu0 0.0
    %1376 = vmatpush1.xpose.msra.mxu0 0.0
    %1377 = vmatprep.subr.mxu0 0.0
    %1378 = vmatpush1.xpose.msra.mxu0 0.0
    %1379 = vmatprep.subr.mxu0 0.0
    %1380 = vmatpush1.xpose.msra.mxu0 0.0
    %1381 = vmatprep.subr.mxu0 0.0
    %1382 = vmatpush1.xpose.msra.mxu0 0.0
    %1383 = vmatprep.subr.mxu0 0.0
    %1384 = vmatpush1.xpose.msra.mxu0 0.0
    %1385 = vmatprep.subr.mxu0 0.0
    %1386 = vmatpush1.xpose.msra.mxu0 0.0
    %1387 = vmatprep.subr.mxu0 0.0
    %1388 = vmatpush1.xpose.msra.mxu0 0.0
    %1389 = vmatprep.subr.mxu0 0.0
    %1390 = vmatpush1.xpose.msra.mxu0 0.0
    %1391 = vmatprep.subr.mxu0 0.0
    %1392 = vmatpush1.xpose.msra.mxu0 0.0
    %1393 = vmatprep.subr.mxu0 0.0
    %1394 = vmatpush1.xpose.msra.mxu0 0.0
    %1395 = vmatprep.subr.mxu0 0.0
    %1396 = vmatpush1.xpose.msra.mxu0 0.0
    %1397 = vmatprep.subr.mxu0 0.0
    %1398 = vmatpush1.xpose.msra.mxu0 0.0
    %1399 = vmatprep.subr.mxu0 0.0
    %1400 = vmatpush1.xpose.msra.mxu0 0.0
    %1401 = vmatprep.subr.mxu0 0.0
    %1402 = vmatpush1.xpose.msra.mxu0 0.0
    %1403 = vmatprep.subr.mxu0 0.0
    %1404 = vmatpush1.xpose.msra.mxu0 0.0
    %v1405 = vand.u32 %v99, 4294901760
    %v1406 = vsub.f32 %v99, %v1405
    %v1407 = vand.u32 %v1406, 4294901760
    %1408 = vmatprep.mubr.f32.mxu0 %v1407
    %v1409 = vand.u32 %v91, 4294901760
    %v1410 = vsub.f32 %v91, %v1409
    %v1411 = vand.u32 %v1410, 4294901760
    %1412 = vmatmul.mubr.f32.gmra.mrb[0].mxu0 %v1411
    %v1413 = vpop.f32.mrb[0].mxu0
    %v1414 = vadd.f32 %v1336, %v1413
    %v1415 = vpop.f32.mrb[0].mxu0
    %1416 = vdwg.mxu0
    %v1417 = vand.u32 %v143, 4294901760
    %v1418 = vsub.f32 %v143, %v1417
    %v1419 = vand.u32 %v1418, 4294901760
    %1420 = vmatprep.subr.mxu0 %v1419
    %v1421 = vand.u32 %v135, 4294901760
    %v1422 = vsub.f32 %v135, %v1421
    %v1423 = vand.u32 %v1422, 4294901760
    %1424 = vmatpush1.xpose.msra.mxu0 %v1423
    %1425 = vmatprep.subr.mxu0 0.0
    %1426 = vmatpush1.xpose.msra.mxu0 0.0
    %1427 = vmatprep.subr.mxu0 0.0
    %1428 = vmatpush1.xpose.msra.mxu0 0.0
    %1429 = vmatprep.subr.mxu0 0.0
    %1430 = vmatpush1.xpose.msra.mxu0 0.0
    %1431 = vmatprep.subr.mxu0 0.0
    %1432 = vmatpush1.xpose.msra.mxu0 0.0
    %1433 = vmatprep.subr.mxu0 0.0
    %1434 = vmatpush1.xpose.msra.mxu0 0.0
    %1435 = vmatprep.subr.mxu0 0.0
    %1436 = vmatpush1.xpose.msra.mxu0 0.0
    %1437 = vmatprep.subr.mxu0 0.0
    %1438 = vmatpush1.xpose.msra.mxu0 0.0
    %1439 = vmatprep.subr.mxu0 0.0
    %1440 = vmatpush1.xpose.msra.mxu0 0.0
    %1441 = vmatprep.subr.mxu0 0.0
    %1442 = vmatpush1.xpose.msra.mxu0 0.0
    %1443 = vmatprep.subr.mxu0 0.0
    %1444 = vmatpush1.xpose.msra.mxu0 0.0
    %1445 = vmatprep.subr.mxu0 0.0
    %1446 = vmatpush1.xpose.msra.mxu0 0.0
    %1447 = vmatprep.subr.mxu0 0.0
    %1448 = vmatpush1.xpose.msra.mxu0 0.0
    %1449 = vmatprep.subr.mxu0 0.0
    %1450 = vmatpush1.xpose.msra.mxu0 0.0
    %1451 = vmatprep.subr.mxu0 0.0
    %1452 = vmatpush1.xpose.msra.mxu0 0.0
    %1453 = vmatprep.subr.mxu0 0.0
    %1454 = vmatpush1.xpose.msra.mxu0 0.0
    %1455 = vmatprep.subr.mxu0 0.0
    %1456 = vmatpush1.xpose.msra.mxu0 0.0
    %1457 = vmatprep.subr.mxu0 0.0
    %1458 = vmatpush1.xpose.msra.mxu0 0.0
    %1459 = vmatprep.subr.mxu0 0.0
    %1460 = vmatpush1.xpose.msra.mxu0 0.0
    %1461 = vmatprep.subr.mxu0 0.0
    %1462 = vmatpush1.xpose.msra.mxu0 0.0
    %1463 = vmatprep.subr.mxu0 0.0
    %1464 = vmatpush1.xpose.msra.mxu0 0.0
    %1465 = vmatprep.subr.mxu0 0.0
    %1466 = vmatpush1.xpose.msra.mxu0 0.0
    %1467 = vmatprep.subr.mxu0 0.0
    %1468 = vmatpush1.xpose.msra.mxu0 0.0
    %1469 = vmatprep.subr.mxu0 0.0
    %1470 = vmatpush1.xpose.msra.mxu0 0.0
    %1471 = vmatprep.subr.mxu0 0.0
    %1472 = vmatpush1.xpose.msra.mxu0 0.0
    %1473 = vmatprep.subr.mxu0 0.0
    %1474 = vmatpush1.xpose.msra.mxu0 0.0
    %1475 = vmatprep.subr.mxu0 0.0
    %1476 = vmatpush1.xpose.msra.mxu0 0.0
    %1477 = vmatprep.subr.mxu0 0.0
    %1478 = vmatpush1.xpose.msra.mxu0 0.0
    %1479 = vmatprep.subr.mxu0 0.0
    %1480 = vmatpush1.xpose.msra.mxu0 0.0
    %1481 = vmatprep.subr.mxu0 0.0
    %1482 = vmatpush1.xpose.msra.mxu0 0.0
    %1483 = vmatprep.subr.mxu0 0.0
    %1484 = vmatpush1.xpose.msra.mxu0 0.0
    %1485 = vmatprep.subr.mxu0 0.0
    %1486 = vmatpush1.xpose.msra.mxu0 0.0
    %v1487 = vand.u32 %v99, 4294901760
    %1488 = vmatprep.mubr.f32.mxu0 %v1487
    %v1489 = vand.u32 %v91, 4294901760
    %1490 = vmatmul.mubr.f32.gmra.mrb[0].mxu0 %v1489
    %v1491 = vpop.f32.mrb[0].mxu0
    %v1492 = vadd.f32 %v1414, %v1491
    %v1493 = vpop.f32.mrb[0].mxu0
    %1494 = vdwg.mxu0
    %v1495 = vand.u32 %v143, 4294901760
    %1496 = vmatprep.subr.mxu0 %v1495
    %v1497 = vand.u32 %v135, 4294901760
    %1498 = vmatpush1.xpose.msra.mxu0 %v1497
    %1499 = vmatprep.subr.mxu0 0.0
    %1500 = vmatpush1.xpose.msra.mxu0 0.0
    %1501 = vmatprep.subr.mxu0 0.0
    %1502 = vmatpush1.xpose.msra.mxu0 0.0
    %1503 = vmatprep.subr.mxu0 0.0
    %1504 = vmatpush1.xpose.msra.mxu0 0.0
    %1505 = vmatprep.subr.mxu0 0.0
    %1506 = vmatpush1.xpose.msra.mxu0 0.0
    %1507 = vmatprep.subr.mxu0 0.0
    %1508 = vmatpush1.xpose.msra.mxu0 0.0
    %1509 = vmatprep.subr.mxu0 0.0
    %1510 = vmatpush1.xpose.msra.mxu0 0.0
    %1511 = vmatprep.subr.mxu0 0.0
    %1512 = vmatpush1.xpose.msra.mxu0 0.0
    %1513 = vmatprep.subr.mxu0 0.0
    %1514 = vmatpush1.xpose.msra.mxu0 0.0
    %1515 = vmatprep.subr.mxu0 0.0
    %1516 = vmatpush1.xpose.msra.mxu0 0.0
    %1517 = vmatprep.subr.mxu0 0.0
    %1518 = vmatpush1.xpose.msra.mxu0 0.0
    %1519 = vmatprep.subr.mxu0 0.0
    %1520 = vmatpush1.xpose.msra.mxu0 0.0
    %1521 = vmatprep.subr.mxu0 0.0
    %1522 = vmatpush1.xpose.msra.mxu0 0.0
    %1523 = vmatprep.subr.mxu0 0.0
    %1524 = vmatpush1.xpose.msra.mxu0 0.0
    %1525 = vmatprep.subr.mxu0 0.0
    %1526 = vmatpush1.xpose.msra.mxu0 0.0
    %1527 = vmatprep.subr.mxu0 0.0
    %1528 = vmatpush1.xpose.msra.mxu0 0.0
    %1529 = vmatprep.subr.mxu0 0.0
    %1530 = vmatpush1.xpose.msra.mxu0 0.0
    %1531 = vmatprep.subr.mxu0 0.0
    %1532 = vmatpush1.xpose.msra.mxu0 0.0
    %1533 = vmatprep.subr.mxu0 0.0
    %1534 = vmatpush1.xpose.msra.mxu0 0.0
    %1535 = vmatprep.subr.mxu0 0.0
    %1536 = vmatpush1.xpose.msra.mxu0 0.0
    %1537 = vmatprep.subr.mxu0 0.0
    %1538 = vmatpush1.xpose.msra.mxu0 0.0
    %1539 = vmatprep.subr.mxu0 0.0
    %1540 = vmatpush1.xpose.msra.mxu0 0.0
    %1541 = vmatprep.subr.mxu0 0.0
    %1542 = vmatpush1.xpose.msra.mxu0 0.0
    %1543 = vmatprep.subr.mxu0 0.0
    %1544 = vmatpush1.xpose.msra.mxu0 0.0
    %1545 = vmatprep.subr.mxu0 0.0
    %1546 = vmatpush1.xpose.msra.mxu0 0.0
    %1547 = vmatprep.subr.mxu0 0.0
    %1548 = vmatpush1.xpose.msra.mxu0 0.0
    %1549 = vmatprep.subr.mxu0 0.0
    %1550 = vmatpush1.xpose.msra.mxu0 0.0
    %1551 = vmatprep.subr.mxu0 0.0
    %1552 = vmatpush1.xpose.msra.mxu0 0.0
    %1553 = vmatprep.subr.mxu0 0.0
    %1554 = vmatpush1.xpose.msra.mxu0 0.0
    %1555 = vmatprep.subr.mxu0 0.0
    %1556 = vmatpush1.xpose.msra.mxu0 0.0
    %1557 = vmatprep.subr.mxu0 0.0
    %1558 = vmatpush1.xpose.msra.mxu0 0.0
    %1559 = vmatprep.subr.mxu0 0.0
    %1560 = vmatpush1.xpose.msra.mxu0 0.0
    %v1561 = vand.u32 %v99, 4294901760
    %1562 = vmatprep.mubr.f32.mxu0 %v1561
    %v1563 = vand.u32 %v91, 4294901760
    %1564 = vmatmul.mubr.f32.gmra.mrb[0].mxu0 %v1563
    %v1565 = vpop.f32.mrb[0].mxu0
    %v1566 = vadd.f32 %v1492, %v1565
    %v1567 = vpop.f32.mrb[0].mxu0
    %1568 = vdwg.mxu0
    %v1569 = vand.u32 %v144, 4294901760
    %1570 = vmatprep.subr.mxu0 %v1569
    %v1571 = vand.u32 %v142, 4294901760
    %1572 = vmatpush1.xpose.msra.mxu0 %v1571
    %1573 = vmatprep.subr.mxu0 0.0
    %1574 = vmatpush1.xpose.msra.mxu0 0.0
    %1575 = vmatprep.subr.mxu0 0.0
    %1576 = vmatpush1.xpose.msra.mxu0 0.0
    %1577 = vmatprep.subr.mxu0 0.0
    %1578 = vmatpush1.xpose.msra.mxu0 0.0
    %1579 = vmatprep.subr.mxu0 0.0
    %1580 = vmatpush1.xpose.msra.mxu0 0.0
    %1581 = vmatprep.subr.mxu0 0.0
    %1582 = vmatpush1.xpose.msra.mxu0 0.0
    %1583 = vmatprep.subr.mxu0 0.0
    %1584 = vmatpush1.xpose.msra.mxu0 0.0
    %1585 = vmatprep.subr.mxu0 0.0
    %1586 = vmatpush1.xpose.msra.mxu0 0.0
    %1587 = vmatprep.subr.mxu0 0.0
    %1588 = vmatpush1.xpose.msra.mxu0 0.0
    %1589 = vmatprep.subr.mxu0 0.0
    %1590 = vmatpush1.xpose.msra.mxu0 0.0
    %1591 = vmatprep.subr.mxu0 0.0
    %1592 = vmatpush1.xpose.msra.mxu0 0.0
    %1593 = vmatprep.subr.mxu0 0.0
    %1594 = vmatpush1.xpose.msra.mxu0 0.0
    %1595 = vmatprep.subr.mxu0 0.0
    %1596 = vmatpush1.xpose.msra.mxu0 0.0
    %1597 = vmatprep.subr.mxu0 0.0
    %1598 = vmatpush1.xpose.msra.mxu0 0.0
    %1599 = vmatprep.subr.mxu0 0.0
    %1600 = vmatpush1.xpose.msra.mxu0 0.0
    %1601 = vmatprep.subr.mxu0 0.0
    %1602 = vmatpush1.xpose.msra.mxu0 0.0
    %1603 = vmatprep.subr.mxu0 0.0
    %1604 = vmatpush1.xpose.msra.mxu0 0.0
    %1605 = vmatprep.subr.mxu0 0.0
    %1606 = vmatpush1.xpose.msra.mxu0 0.0
    %1607 = vmatprep.subr.mxu0 0.0
    %1608 = vmatpush1.xpose.msra.mxu0 0.0
    %1609 = vmatprep.subr.mxu0 0.0
    %1610 = vmatpush1.xpose.msra.mxu0 0.0
    %1611 = vmatprep.subr.mxu0 0.0
    %1612 = vmatpush1.xpose.msra.mxu0 0.0
    %1613 = vmatprep.subr.mxu0 0.0
    %1614 = vmatpush1.xpose.msra.mxu0 0.0
    %1615 = vmatprep.subr.mxu0 0.0
    %1616 = vmatpush1.xpose.msra.mxu0 0.0
    %1617 = vmatprep.subr.mxu0 0.0
    %1618 = vmatpush1.xpose.msra.mxu0 0.0
    %1619 = vmatprep.subr.mxu0 0.0
    %1620 = vmatpush1.xpose.msra.mxu0 0.0
    %1621 = vmatprep.subr.mxu0 0.0
    %1622 = vmatpush1.xpose.msra.mxu0 0.0
    %1623 = vmatprep.subr.mxu0 0.0
    %1624 = vmatpush1.xpose.msra.mxu0 0.0
    %1625 = vmatprep.subr.mxu0 0.0
    %1626 = vmatpush1.xpose.msra.mxu0 0.0
    %1627 = vmatprep.subr.mxu0 0.0
    %1628 = vmatpush1.xpose.msra.mxu0 0.0
    %1629 = vmatprep.subr.mxu0 0.0
    %1630 = vmatpush1.xpose.msra.mxu0 0.0
    %1631 = vmatprep.subr.mxu0 0.0
    %1632 = vmatpush1.xpose.msra.mxu0 0.0
    %1633 = vmatprep.subr.mxu0 0.0
    %1634 = vmatpush1.xpose.msra.mxu0 0.0
    %v1635 = vand.u32 %v100, 4294901760
    %v1636 = vsub.f32 %v100, %v1635
    %v1637 = vand.u32 %v1636, 4294901760
    %v1638 = vsub.f32 %v1636, %v1637
    %v1639 = vand.u32 %v1638, 4294901760
    %1640 = vmatprep.mubr.f32.mxu0 %v1639
    %v1641 = vand.u32 %v98, 4294901760
    %v1642 = vsub.f32 %v98, %v1641
    %v1643 = vand.u32 %v1642, 4294901760
    %v1644 = vsub.f32 %v1642, %v1643
    %v1645 = vand.u32 %v1644, 4294901760
    %1646 = vmatmul.mubr.f32.gmra.mrb[0].mxu0 %v1645
    %v1647 = vpop.f32.mrb[0].mxu0
    %v1648 = vadd.f32 %v1566, %v1647
    %v1649 = vpop.f32.mrb[0].mxu0
    %1650 = vdwg.mxu0
    %v1651 = vand.u32 %v144, 4294901760
    %v1652 = vsub.f32 %v144, %v1651
    %v1653 = vand.u32 %v1652, 4294901760
    %v1654 = vsub.f32 %v1652, %v1653
    %v1655 = vand.u32 %v1654, 4294901760
    %1656 = vmatprep.subr.mxu0 %v1655
    %v1657 = vand.u32 %v142, 4294901760
    %v1658 = vsub.f32 %v142, %v1657
    %v1659 = vand.u32 %v1658, 4294901760
    %v1660 = vsub.f32 %v1658, %v1659
    %v1661 = vand.u32 %v1660, 4294901760
    %1662 = vmatpush1.xpose.msra.mxu0 %v1661
    %1663 = vmatprep.subr.mxu0 0.0
    %1664 = vmatpush1.xpose.msra.mxu0 0.0
    %1665 = vmatprep.subr.mxu0 0.0
    %1666 = vmatpush1.xpose.msra.mxu0 0.0
    %1667 = vmatprep.subr.mxu0 0.0
    %1668 = vmatpush1.xpose.msra.mxu0 0.0
    %1669 = vmatprep.subr.mxu0 0.0
    %1670 = vmatpush1.xpose.msra.mxu0 0.0
    %1671 = vmatprep.subr.mxu0 0.0
    %1672 = vmatpush1.xpose.msra.mxu0 0.0
    %1673 = vmatprep.subr.mxu0 0.0
    %1674 = vmatpush1.xpose.msra.mxu0 0.0
    %1675 = vmatprep.subr.mxu0 0.0
    %1676 = vmatpush1.xpose.msra.mxu0 0.0
    %1677 = vmatprep.subr.mxu0 0.0
    %1678 = vmatpush1.xpose.msra.mxu0 0.0
    %1679 = vmatprep.subr.mxu0 0.0
    %1680 = vmatpush1.xpose.msra.mxu0 0.0
    %1681 = vmatprep.subr.mxu0 0.0
    %1682 = vmatpush1.xpose.msra.mxu0 0.0
    %1683 = vmatprep.subr.mxu0 0.0
    %1684 = vmatpush1.xpose.msra.mxu0 0.0
    %1685 = vmatprep.subr.mxu0 0.0
    %1686 = vmatpush1.xpose.msra.mxu0 0.0
    %1687 = vmatprep.subr.mxu0 0.0
    %1688 = vmatpush1.xpose.msra.mxu0 0.0
    %1689 = vmatprep.subr.mxu0 0.0
    %1690 = vmatpush1.xpose.msra.mxu0 0.0
    %1691 = vmatprep.subr.mxu0 0.0
    %1692 = vmatpush1.xpose.msra.mxu0 0.0
    %1693 = vmatprep.subr.mxu0 0.0
    %1694 = vmatpush1.xpose.msra.mxu0 0.0
    %1695 = vmatprep.subr.mxu0 0.0
    %1696 = vmatpush1.xpose.msra.mxu0 0.0
    %1697 = vmatprep.subr.mxu0 0.0
    %1698 = vmatpush1.xpose.msra.mxu0 0.0
    %1699 = vmatprep.subr.mxu0 0.0
    %1700 = vmatpush1.xpose.msra.mxu0 0.0
    %1701 = vmatprep.subr.mxu0 0.0
    %1702 = vmatpush1.xpose.msra.mxu0 0.0
    %1703 = vmatprep.subr.mxu0 0.0
    %1704 = vmatpush1.xpose.msra.mxu0 0.0
    %1705 = vmatprep.subr.mxu0 0.0
    %1706 = vmatpush1.xpose.msra.mxu0 0.0
    %1707 = vmatprep.subr.mxu0 0.0
    %1708 = vmatpush1.xpose.msra.mxu0 0.0
    %1709 = vmatprep.subr.mxu0 0.0
    %1710 = vmatpush1.xpose.msra.mxu0 0.0
    %1711 = vmatprep.subr.mxu0 0.0
    %1712 = vmatpush1.xpose.msra.mxu0 0.0
    %1713 = vmatprep.subr.mxu0 0.0
    %1714 = vmatpush1.xpose.msra.mxu0 0.0
    %1715 = vmatprep.subr.mxu0 0.0
    %1716 = vmatpush1.xpose.msra.mxu0 0.0
    %1717 = vmatprep.subr.mxu0 0.0
    %1718 = vmatpush1.xpose.msra.mxu0 0.0
    %1719 = vmatprep.subr.mxu0 0.0
    %1720 = vmatpush1.xpose.msra.mxu0 0.0
    %1721 = vmatprep.subr.mxu0 0.0
    %1722 = vmatpush1.xpose.msra.mxu0 0.0
    %1723 = vmatprep.subr.mxu0 0.0
    %1724 = vmatpush1.xpose.msra.mxu0 0.0
    %v1725 = vand.u32 %v100, 4294901760
    %1726 = vmatprep.mubr.f32.mxu0 %v1725
    %v1727 = vand.u32 %v98, 4294901760
    %1728 = vmatmul.mubr.f32.gmra.mrb[0].mxu0 %v1727
    %v1729 = vpop.f32.mrb[0].mxu0
    %v1730 = vadd.f32 %v1648, %v1729
    %v1731 = vpop.f32.mrb[0].mxu0
    %1732 = vdwg.mxu0
    %v1733 = vand.u32 %v144, 4294901760
    %v1734 = vsub.f32 %v144, %v1733
    %1735 = vmatprep.subr.mxu0 %v1734
    %v1736 = vand.u32 %v142, 4294901760
    %v1737 = vsub.f32 %v142, %v1736
    %1738 = vmatpush1.xpose.msra.mxu0 %v1737
    %1739 = vmatprep.subr.mxu0 0.0
    %1740 = vmatpush1.xpose.msra.mxu0 0.0
    %1741 = vmatprep.subr.mxu0 0.0
    %1742 = vmatpush1.xpose.msra.mxu0 0.0
    %1743 = vmatprep.subr.mxu0 0.0
    %1744 = vmatpush1.xpose.msra.mxu0 0.0
    %1745 = vmatprep.subr.mxu0 0.0
    %1746 = vmatpush1.xpose.msra.mxu0 0.0
    %1747 = vmatprep.subr.mxu0 0.0
    %1748 = vmatpush1.xpose.msra.mxu0 0.0
    %1749 = vmatprep.subr.mxu0 0.0
    %1750 = vmatpush1.xpose.msra.mxu0 0.0
    %1751 = vmatprep.subr.mxu0 0.0
    %1752 = vmatpush1.xpose.msra.mxu0 0.0
    %1753 = vmatprep.subr.mxu0 0.0
    %1754 = vmatpush1.xpose.msra.mxu0 0.0
    %1755 = vmatprep.subr.mxu0 0.0
    %1756 = vmatpush1.xpose.msra.mxu0 0.0
    %1757 = vmatprep.subr.mxu0 0.0
    %1758 = vmatpush1.xpose.msra.mxu0 0.0
    %1759 = vmatprep.subr.mxu0 0.0
    %1760 = vmatpush1.xpose.msra.mxu0 0.0
    %1761 = vmatprep.subr.mxu0 0.0
    %1762 = vmatpush1.xpose.msra.mxu0 0.0
    %1763 = vmatprep.subr.mxu0 0.0
    %1764 = vmatpush1.xpose.msra.mxu0 0.0
    %1765 = vmatprep.subr.mxu0 0.0
    %1766 = vmatpush1.xpose.msra.mxu0 0.0
    %1767 = vmatprep.subr.mxu0 0.0
    %1768 = vmatpush1.xpose.msra.mxu0 0.0
    %1769 = vmatprep.subr.mxu0 0.0
    %1770 = vmatpush1.xpose.msra.mxu0 0.0
    %1771 = vmatprep.subr.mxu0 0.0
    %1772 = vmatpush1.xpose.msra.mxu0 0.0
    %1773 = vmatprep.subr.mxu0 0.0
    %1774 = vmatpush1.xpose.msra.mxu0 0.0
    %1775 = vmatprep.subr.mxu0 0.0
    %1776 = vmatpush1.xpose.msra.mxu0 0.0
    %1777 = vmatprep.subr.mxu0 0.0
    %1778 = vmatpush1.xpose.msra.mxu0 0.0
    %1779 = vmatprep.subr.mxu0 0.0
    %1780 = vmatpush1.xpose.msra.mxu0 0.0
    %1781 = vmatprep.subr.mxu0 0.0
    %1782 = vmatpush1.xpose.msra.mxu0 0.0
    %1783 = vmatprep.subr.mxu0 0.0
    %1784 = vmatpush1.xpose.msra.mxu0 0.0
    %1785 = vmatprep.subr.mxu0 0.0
    %1786 = vmatpush1.xpose.msra.mxu0 0.0
    %1787 = vmatprep.subr.mxu0 0.0
    %1788 = vmatpush1.xpose.msra.mxu0 0.0
    %1789 = vmatprep.subr.mxu0 0.0
    %1790 = vmatpush1.xpose.msra.mxu0 0.0
    %1791 = vmatprep.subr.mxu0 0.0
    %1792 = vmatpush1.xpose.msra.mxu0 0.0
    %1793 = vmatprep.subr.mxu0 0.0
    %1794 = vmatpush1.xpose.msra.mxu0 0.0
    %1795 = vmatprep.subr.mxu0 0.0
    %1796 = vmatpush1.xpose.msra.mxu0 0.0
    %1797 = vmatprep.subr.mxu0 0.0
    %1798 = vmatpush1.xpose.msra.mxu0 0.0
    %1799 = vmatprep.subr.mxu0 0.0
    %1800 = vmatpush1.xpose.msra.mxu0 0.0
    %v1801 = vand.u32 %v100, 4294901760
    %v1802 = vsub.f32 %v100, %v1801
    %1803 = vmatprep.mubr.f32.mxu0 %v1802
    %v1804 = vand.u32 %v98, 4294901760
    %v1805 = vsub.f32 %v98, %v1804
    %1806 = vmatmul.mubr.f32.gmra.mrb[0].mxu0 %v1805
    %v1807 = vpop.f32.mrb[0].mxu0
    %v1808 = vadd.f32 %v1730, %v1807
    %v1809 = vpop.f32.mrb[0].mxu0
    %1810 = vdwg.mxu0
    %v1811 = vand.u32 %v144, 4294901760
    %1812 = vmatprep.subr.mxu0 %v1811
    %v1813 = vand.u32 %v142, 4294901760
    %1814 = vmatpush1.xpose.msra.mxu0 %v1813
    %1815 = vmatprep.subr.mxu0 0.0
    %1816 = vmatpush1.xpose.msra.mxu0 0.0
    %1817 = vmatprep.subr.mxu0 0.0
    %1818 = vmatpush1.xpose.msra.mxu0 0.0
    %1819 = vmatprep.subr.mxu0 0.0
    %1820 = vmatpush1.xpose.msra.mxu0 0.0
    %1821 = vmatprep.subr.mxu0 0.0
    %1822 = vmatpush1.xpose.msra.mxu0 0.0
    %1823 = vmatprep.subr.mxu0 0.0
    %1824 = vmatpush1.xpose.msra.mxu0 0.0
    %1825 = vmatprep.subr.mxu0 0.0
    %1826 = vmatpush1.xpose.msra.mxu0 0.0
    %1827 = vmatprep.subr.mxu0 0.0
    %1828 = vmatpush1.xpose.msra.mxu0 0.0
    %1829 = vmatprep.subr.mxu0 0.0
    %1830 = vmatpush1.xpose.msra.mxu0 0.0
    %1831 = vmatprep.subr.mxu0 0.0
    %1832 = vmatpush1.xpose.msra.mxu0 0.0
    %1833 = vmatprep.subr.mxu0 0.0
    %1834 = vmatpush1.xpose.msra.mxu0 0.0
    %1835 = vmatprep.subr.mxu0 0.0
    %1836 = vmatpush1.xpose.msra.mxu0 0.0
    %1837 = vmatprep.subr.mxu0 0.0
    %1838 = vmatpush1.xpose.msra.mxu0 0.0
    %1839 = vmatprep.subr.mxu0 0.0
    %1840 = vmatpush1.xpose.msra.mxu0 0.0
    %1841 = vmatprep.subr.mxu0 0.0
    %1842 = vmatpush1.xpose.msra.mxu0 0.0
    %1843 = vmatprep.subr.mxu0 0.0
    %1844 = vmatpush1.xpose.msra.mxu0 0.0
    %1845 = vmatprep.subr.mxu0 0.0
    %1846 = vmatpush1.xpose.msra.mxu0 0.0
    %1847 = vmatprep.subr.mxu0 0.0
    %1848 = vmatpush1.xpose.msra.mxu0 0.0
    %1849 = vmatprep.subr.mxu0 0.0
    %1850 = vmatpush1.xpose.msra.mxu0 0.0
    %1851 = vmatprep.subr.mxu0 0.0
    %1852 = vmatpush1.xpose.msra.mxu0 0.0
    %1853 = vmatprep.subr.mxu0 0.0
    %1854 = vmatpush1.xpose.msra.mxu0 0.0
    %1855 = vmatprep.subr.mxu0 0.0
    %1856 = vmatpush1.xpose.msra.mxu0 0.0
    %1857 = vmatprep.subr.mxu0 0.0
    %1858 = vmatpush1.xpose.msra.mxu0 0.0
    %1859 = vmatprep.subr.mxu0 0.0
    %1860 = vmatpush1.xpose.msra.mxu0 0.0
    %1861 = vmatprep.subr.mxu0 0.0
    %1862 = vmatpush1.xpose.msra.mxu0 0.0
    %1863 = vmatprep.subr.mxu0 0.0
    %1864 = vmatpush1.xpose.msra.mxu0 0.0
    %1865 = vmatprep.subr.mxu0 0.0
    %1866 = vmatpush1.xpose.msra.mxu0 0.0
    %1867 = vmatprep.subr.mxu0 0.0
    %1868 = vmatpush1.xpose.msra.mxu0 0.0
    %1869 = vmatprep.subr.mxu0 0.0
    %1870 = vmatpush1.xpose.msra.mxu0 0.0
    %1871 = vmatprep.subr.mxu0 0.0
    %1872 = vmatpush1.xpose.msra.mxu0 0.0
    %1873 = vmatprep.subr.mxu0 0.0
    %1874 = vmatpush1.xpose.msra.mxu0 0.0
    %1875 = vmatprep.subr.mxu0 0.0
    %1876 = vmatpush1.xpose.msra.mxu0 0.0
    %v1877 = vand.u32 %v100, 4294901760
    %v1878 = vsub.f32 %v100, %v1877
    %v1879 = vand.u32 %v1878, 4294901760
    %1880 = vmatprep.mubr.f32.mxu0 %v1879
    %v1881 = vand.u32 %v98, 4294901760
    %v1882 = vsub.f32 %v98, %v1881
    %v1883 = vand.u32 %v1882, 4294901760
    %1884 = vmatmul.mubr.f32.gmra.mrb[0].mxu0 %v1883
    %v1885 = vpop.f32.mrb[0].mxu0
    %v1886 = vadd.f32 %v1808, %v1885
    %v1887 = vpop.f32.mrb[0].mxu0
    %1888 = vdwg.mxu0
    %v1889 = vand.u32 %v144, 4294901760
    %v1890 = vsub.f32 %v144, %v1889
    %v1891 = vand.u32 %v1890, 4294901760
    %1892 = vmatprep.subr.mxu0 %v1891
    %v1893 = vand.u32 %v142, 4294901760
    %v1894 = vsub.f32 %v142, %v1893
    %v1895 = vand.u32 %v1894, 4294901760
    %1896 = vmatpush1.xpose.msra.mxu0 %v1895
    %1897 = vmatprep.subr.mxu0 0.0
    %1898 = vmatpush1.xpose.msra.mxu0 0.0
    %1899 = vmatprep.subr.mxu0 0.0
    %1900 = vmatpush1.xpose.msra.mxu0 0.0
    %1901 = vmatprep.subr.mxu0 0.0
    %1902 = vmatpush1.xpose.msra.mxu0 0.0
    %1903 = vmatprep.subr.mxu0 0.0
    %1904 = vmatpush1.xpose.msra.mxu0 0.0
    %1905 = vmatprep.subr.mxu0 0.0
    %1906 = vmatpush1.xpose.msra.mxu0 0.0
    %1907 = vmatprep.subr.mxu0 0.0
    %1908 = vmatpush1.xpose.msra.mxu0 0.0
    %1909 = vmatprep.subr.mxu0 0.0
    %1910 = vmatpush1.xpose.msra.mxu0 0.0
    %1911 = vmatprep.subr.mxu0 0.0
    %1912 = vmatpush1.xpose.msra.mxu0 0.0
    %1913 = vmatprep.subr.mxu0 0.0
    %1914 = vmatpush1.xpose.msra.mxu0 0.0
    %1915 = vmatprep.subr.mxu0 0.0
    %1916 = vmatpush1.xpose.msra.mxu0 0.0
    %1917 = vmatprep.subr.mxu0 0.0
    %1918 = vmatpush1.xpose.msra.mxu0 0.0
    %1919 = vmatprep.subr.mxu0 0.0
    %1920 = vmatpush1.xpose.msra.mxu0 0.0
    %1921 = vmatprep.subr.mxu0 0.0
    %1922 = vmatpush1.xpose.msra.mxu0 0.0
    %1923 = vmatprep.subr.mxu0 0.0
    %1924 = vmatpush1.xpose.msra.mxu0 0.0
    %1925 = vmatprep.subr.mxu0 0.0
    %1926 = vmatpush1.xpose.msra.mxu0 0.0
    %1927 = vmatprep.subr.mxu0 0.0
    %1928 = vmatpush1.xpose.msra.mxu0 0.0
    %1929 = vmatprep.subr.mxu0 0.0
    %1930 = vmatpush1.xpose.msra.mxu0 0.0
    %1931 = vmatprep.subr.mxu0 0.0
    %1932 = vmatpush1.xpose.msra.mxu0 0.0
    %1933 = vmatprep.subr.mxu0 0.0
    %1934 = vmatpush1.xpose.msra.mxu0 0.0
    %1935 = vmatprep.subr.mxu0 0.0
    %1936 = vmatpush1.xpose.msra.mxu0 0.0
    %1937 = vmatprep.subr.mxu0 0.0
    %1938 = vmatpush1.xpose.msra.mxu0 0.0
    %1939 = vmatprep.subr.mxu0 0.0
    %1940 = vmatpush1.xpose.msra.mxu0 0.0
    %1941 = vmatprep.subr.mxu0 0.0
    %1942 = vmatpush1.xpose.msra.mxu0 0.0
    %1943 = vmatprep.subr.mxu0 0.0
    %1944 = vmatpush1.xpose.msra.mxu0 0.0
    %1945 = vmatprep.subr.mxu0 0.0
    %1946 = vmatpush1.xpose.msra.mxu0 0.0
    %1947 = vmatprep.subr.mxu0 0.0
    %1948 = vmatpush1.xpose.msra.mxu0 0.0
    %1949 = vmatprep.subr.mxu0 0.0
    %1950 = vmatpush1.xpose.msra.mxu0 0.0
    %1951 = vmatprep.subr.mxu0 0.0
    %1952 = vmatpush1.xpose.msra.mxu0 0.0
    %1953 = vmatprep.subr.mxu0 0.0
    %1954 = vmatpush1.xpose.msra.mxu0 0.0
    %1955 = vmatprep.subr.mxu0 0.0
    %1956 = vmatpush1.xpose.msra.mxu0 0.0
    %1957 = vmatprep.subr.mxu0 0.0
    %1958 = vmatpush1.xpose.msra.mxu0 0.0
    %v1959 = vand.u32 %v100, 4294901760
    %1960 = vmatprep.mubr.f32.mxu0 %v1959
    %v1961 = vand.u32 %v98, 4294901760
    %1962 = vmatmul.mubr.f32.gmra.mrb[0].mxu0 %v1961
    %v1963 = vpop.f32.mrb[0].mxu0
    %v1964 = vadd.f32 %v1886, %v1963
    %v1965 = vpop.f32.mrb[0].mxu0
    %1966 = vdwg.mxu0
    %v1967 = vand.u32 %v144, 4294901760
    %1968 = vmatprep.subr.mxu0 %v1967
    %v1969 = vand.u32 %v142, 4294901760
    %1970 = vmatpush1.xpose.msra.mxu0 %v1969
    %1971 = vmatprep.subr.mxu0 0.0
    %1972 = vmatpush1.xpose.msra.mxu0 0.0
    %1973 = vmatprep.subr.mxu0 0.0
    %1974 = vmatpush1.xpose.msra.mxu0 0.0
    %1975 = vmatprep.subr.mxu0 0.0
    %1976 = vmatpush1.xpose.msra.mxu0 0.0
    %1977 = vmatprep.subr.mxu0 0.0
    %1978 = vmatpush1.xpose.msra.mxu0 0.0
    %1979 = vmatprep.subr.mxu0 0.0
    %1980 = vmatpush1.xpose.msra.mxu0 0.0
    %1981 = vmatprep.subr.mxu0 0.0
    %1982 = vmatpush1.xpose.msra.mxu0 0.0
    %1983 = vmatprep.subr.mxu0 0.0
    %1984 = vmatpush1.xpose.msra.mxu0 0.0
    %1985 = vmatprep.subr.mxu0 0.0
    %1986 = vmatpush1.xpose.msra.mxu0 0.0
    %1987 = vmatprep.subr.mxu0 0.0
    %1988 = vmatpush1.xpose.msra.mxu0 0.0
    %1989 = vmatprep.subr.mxu0 0.0
    %1990 = vmatpush1.xpose.msra.mxu0 0.0
    %1991 = vmatprep.subr.mxu0 0.0
    %1992 = vmatpush1.xpose.msra.mxu0 0.0
    %1993 = vmatprep.subr.mxu0 0.0
    %1994 = vmatpush1.xpose.msra.mxu0 0.0
    %1995 = vmatprep.subr.mxu0 0.0
    %1996 = vmatpush1.xpose.msra.mxu0 0.0
    %1997 = vmatprep.subr.mxu0 0.0
    %1998 = vmatpush1.xpose.msra.mxu0 0.0
    %1999 = vmatprep.subr.mxu0 0.0
    %2000 = vmatpush1.xpose.msra.mxu0 0.0
    %2001 = vmatprep.subr.mxu0 0.0
    %2002 = vmatpush1.xpose.msra.mxu0 0.0
    %2003 = vmatprep.subr.mxu0 0.0
    %2004 = vmatpush1.xpose.msra.mxu0 0.0
    %2005 = vmatprep.subr.mxu0 0.0
    %2006 = vmatpush1.xpose.msra.mxu0 0.0
    %2007 = vmatprep.subr.mxu0 0.0
    %2008 = vmatpush1.xpose.msra.mxu0 0.0
    %2009 = vmatprep.subr.mxu0 0.0
    %2010 = vmatpush1.xpose.msra.mxu0 0.0
    %2011 = vmatprep.subr.mxu0 0.0
    %2012 = vmatpush1.xpose.msra.mxu0 0.0
    %2013 = vmatprep.subr.mxu0 0.0
    %2014 = vmatpush1.xpose.msra.mxu0 0.0
    %2015 = vmatprep.subr.mxu0 0.0
    %2016 = vmatpush1.xpose.msra.mxu0 0.0
    %2017 = vmatprep.subr.mxu0 0.0
    %2018 = vmatpush1.xpose.msra.mxu0 0.0
    %2019 = vmatprep.subr.mxu0 0.0
    %2020 = vmatpush1.xpose.msra.mxu0 0.0
    %2021 = vmatprep.subr.mxu0 0.0
    %2022 = vmatpush1.xpose.msra.mxu0 0.0
    %2023 = vmatprep.subr.mxu0 0.0
    %2024 = vmatpush1.xpose.msra.mxu0 0.0
    %2025 = vmatprep.subr.mxu0 0.0
    %2026 = vmatpush1.xpose.msra.mxu0 0.0
    %2027 = vmatprep.subr.mxu0 0.0
    %2028 = vmatpush1.xpose.msra.mxu0 0.0
    %2029 = vmatprep.subr.mxu0 0.0
    %2030 = vmatpush1.xpose.msra.mxu0 0.0
    %2031 = vmatprep.subr.mxu0 0.0
    %2032 = vmatpush1.xpose.msra.mxu0 0.0
    %v2033 = vand.u32 %v100, 4294901760
    %2034 = vmatprep.mubr.f32.mxu0 %v2033
    %v2035 = vand.u32 %v98, 4294901760
    %2036 = vmatmul.mubr.f32.gmra.mrb[0].mxu0 %v2035
    %v2037 = vpop.f32.mrb[0].mxu0
    %v2038 = vadd.f32 %v1964, %v2037
    %v2039 = vpop.f32.mrb[0].mxu0
    %2040 = vdwg.mxu0
    %v2041 = vadd.f32 %v64, %v2038
    %vm2042 = vcmask 9216
    %2043 = vst.msk [vmem:[#allocation7] sm:$0x3] %vm2042, %v2041
    %v2044 = vld [vmem:[%s3] sm:$0x3]
    %v2045 = vmul.f32 %v60, %v60
    %v2046 = vmul.f32 %v61, %v61
    %v2049 = vcombine.high %v2045, %v2045
    %v2051 = vunpack.c.l.s4 1983009808
    %v2052 = vunpack.c.0.s8 %v2051
    %v2053 = vlaneseq
    %v2054 = vshrl.u32 %v2053, 7
    %v2055 = vsub.s32 %v2052, %v2054
    %v2056 = vrot.slane %v2045, %v2055
    %v2058 = vunpack.c.l.s4 1983009808
    %v2059 = vunpack.c.0.s8 %v2058
    %v2060 = vlaneseq
    %v2061 = vshrl.u32 %v2060, 7
    %v2062 = vsub.s32 %v2059, %v2061
    %v2063 = vrot.slane %v2049, %v2062
    %v2064 = vcombine.high %v2056, %v2056
    %v2065 = vcombine.high %v2063, %v2063
    %v2066 = vcombine.high %v2046, %v2046
    %v2068 = vunpack.c.l.s4 1983009808
    %v2069 = vunpack.c.0.s8 %v2068
    %v2070 = vlaneseq
    %v2071 = vshrl.u32 %v2070, 7
    %v2072 = vsub.s32 %v2069, %v2071
    %v2073 = vrot.slane %v2046, %v2072
    %v2075 = vunpack.c.l.s4 1983009808
    %v2076 = vunpack.c.0.s8 %v2075
    %v2077 = vlaneseq
    %v2078 = vshrl.u32 %v2077, 7
    %v2079 = vsub.s32 %v2076, %v2078
    %v2080 = vrot.slane %v2066, %v2079
    %v2081 = vcombine.high %v2073, %v2073
    %v2082 = vcombine.high %v2080, %v2080
    %vm2091 = vcmask 1041408
    %v2092 = vsel %vm2091, %v2056, 0.0
    %v2093 = vsel %vm2091, %v2064, 0.0
    %v2094 = vadd.f32 %v2092, %v2093
    %v2095 = vsel %vm2091, %v2063, 0.0
    %v2096 = vadd.f32 %v2094, %v2095
    %v2097 = vsel %vm2091, %v2065, 0.0
    %v2098 = vadd.f32 %v2096, %v2097
    %v2099 = vsel %vm2091, %v2073, 0.0
    %v2100 = vadd.f32 %v2098, %v2099
    %v2101 = vsel %vm2091, %v2081, 0.0
    %v2102 = vadd.f32 %v2100, %v2101
    %v2103 = vsel %vm2091, %v2080, 0.0
    %v2104 = vadd.f32 %v2102, %v2103
    %v2105 = vsel %vm2091, %v2082, 0.0
    %v2106 = vadd.f32 %v2104, %v2105
    %2107 = vadd.xlane.f32.xlu0 %v2106
    %v2108 = vpop.xlane.xlu0 %2107
    %v2109 = vadd.f32 %v2044, %v2108
    %vm2110 = vcmask 1024
    %2111 = vst.msk [vmem:[%s3] sm:$0x3] %vm2110, %v2109
    %v2112 = vld [vmem:[%s4] sm:$0x3]
    %v2113 = vmul.f32 %v62, %v62
    %v2114 = vmul.f32 %v63, %v63
    %v2117 = vcombine.high %v2113, %v2113
    %v2119 = vunpack.c.l.s4 1983009808
    %v2120 = vunpack.c.0.s8 %v2119
    %v2121 = vlaneseq
    %v2122 = vshrl.u32 %v2121, 7
    %v2123 = vsub.s32 %v2120, %v2122
    %v2124 = vrot.slane %v2113, %v2123
    %v2126 = vunpack.c.l.s4 1983009808
    %v2127 = vunpack.c.0.s8 %v2126
    %v2128 = vlaneseq
    %v2129 = vshrl.u32 %v2128, 7
    %v2130 = vsub.s32 %v2127, %v2129
    %v2131 = vrot.slane %v2117, %v2130
    %v2132 = vcombine.high %v2124, %v2124
    %v2133 = vcombine.high %v2131, %v2131
    %v2134 = vcombine.high %v2114, %v2114
    %v2136 = vunpack.c.l.s4 1983009808
    %v2137 = vunpack.c.0.s8 %v2136
    %v2138 = vlaneseq
    %v2139 = vshrl.u32 %v2138, 7
    %v2140 = vsub.s32 %v2137, %v2139
    %v2141 = vrot.slane %v2114, %v2140
    %v2143 = vunpack.c.l.s4 1983009808
    %v2144 = vunpack.c.0.s8 %v2143
    %v2145 = vlaneseq
    %v2146 = vshrl.u32 %v2145, 7
    %v2147 = vsub.s32 %v2144, %v2146
    %v2148 = vrot.slane %v2134, %v2147
    %v2149 = vcombine.high %v2141, %v2141
    %v2150 = vcombine.high %v2148, %v2148
    %v2159 = vsel %vm2091, %v2124, 0.0
    %v2160 = vsel %vm2091, %v2132, 0.0
    %v2161 = vadd.f32 %v2159, %v2160
    %v2162 = vsel %vm2091, %v2131, 0.0
    %v2163 = vadd.f32 %v2161, %v2162
    %v2164 = vsel %vm2091, %v2133, 0.0
    %v2165 = vadd.f32 %v2163, %v2164
    %v2166 = vsel %vm2091, %v2141, 0.0
    %v2167 = vadd.f32 %v2165, %v2166
    %v2168 = vsel %vm2091, %v2149, 0.0
    %v2169 = vadd.f32 %v2167, %v2168
    %v2170 = vsel %vm2091, %v2148, 0.0
    %v2171 = vadd.f32 %v2169, %v2170
    %v2172 = vsel %vm2091, %v2150, 0.0
    %v2173 = vadd.f32 %v2171, %v2172
    %2174 = vadd.xlane.f32.xlu0 %v2173
    %v2175 = vpop.xlane.xlu0 %2174
    %v2176 = vadd.f32 %v2112, %v2175
    %2177 = vst.msk [vmem:[%s4] sm:$0x3] %vm2110, %v2176
    // Predicated region
    $region22: #{tpu_custom_call.1} parent=1 // pred_check
      _
    $region23: #{tpu_custom_call.1} parent=1 // pred_check_branch
      %2179 = sbr.rel (0) target = $region25
    $region24: #{tpu_custom_call.1} parent=1 // pred_region
      %s2181 = ssub.s32 32, 32
      %2182 = vsyncadd [#allocation4], %s2181
      %s2184 = sshll.u32 [#allocation7], 4
      %s2185 = int_to_ptr.vmem [resolvable:$true] %s2184
      %2187 = dma.vmem_to_hbm [thread:$0]  %s2185, 32, %s2, [#allocation4]
    $region25: #{tpu_custom_call.1} parent=1 // pred_fallthru
      _
    // Predicated region
    $region26: #{tpu_custom_call.1} parent=1 // pred_check
      _
    $region27: #{tpu_custom_call.1} parent=1 // pred_check_branch
      %2189 = sbr.rel (0) target = $region29
    $region28: #{tpu_custom_call.1} parent=1 // pred_region
      _
    $region29: #{tpu_custom_call.1} parent=1 // pred_fallthru
      _
    // Predicated region
    $region30: #{tpu_custom_call.1} parent=1 // pred_check
      _
    $region31: #{tpu_custom_call.1} parent=1 // pred_check_branch
      %2191 = sbr.rel (0) target = $region33
    $region32: #{tpu_custom_call.1} parent=1 // pred_region
      _
    $region33: #{tpu_custom_call.1} parent=1 // pred_fallthru
      _
    // Predicated region
    $region34: #{tpu_custom_call.1} parent=1 // pred_check
      _
    $region35: #{tpu_custom_call.1} parent=1 // pred_check_branch
      %2193 = sbr.rel (0) target = $region37
    $region36: #{tpu_custom_call.1} parent=1 // pred_region
      %2194 = dma.done [#allocation4], 32
    $region37: #{tpu_custom_call.1} parent=1 // pred_fallthru
      _
    // Predicated region
    $region38: #{tpu_custom_call.1} parent=1 // pred_check
      _
    $region39: #{tpu_custom_call.1} parent=1 // pred_check_branch
      %2196 = sbr.rel (0) target = $region41
    $region40: #{tpu_custom_call.1} parent=1 // pred_region
      _
    $region41: #{tpu_custom_call.1} parent=1 // pred_fallthru
      _
    // Predicated region
    $region42: #{tpu_custom_call.1} parent=1 // pred_check
      _
    $region43: #{tpu_custom_call.1} parent=1 // pred_check_branch
      %2198 = sbr.rel (0) target = $region45
    $region44: #{tpu_custom_call.1} parent=1 // pred_region
      _
    $region45: #{tpu_custom_call.1} parent=1 // pred_fallthru
      _
    %2199 = vsyncpa [#allocation3], 1
    %2200 = vsyncpa [#allocation6], 1
    %2201 = vsyncpa [#allocation4], 1

</llo_original>
